<compile_context>
chip_gen: v7x
topology: tpu7x:2x2x1
jax: 0.10.0
libtpu: 0.0.40
codegen_flags: <defaults>
</compile_context>

<pallas_src>
import numpy as np
import jax
import jax.numpy as jnp
from jax.experimental import pallas as pl
from jax.experimental.pallas import tpu as pltpu

# ---- small hyper-parameters consistent with CNN.__init__ -------------------------
B = 8            # batch
F = 32           # num_features
H = 256          # hidden_size
C1 = 16          # channel_1
C2 = 32          # channel_2
C3 = 32          # channel_3
K1 = 5           # kernel1
L1 = H // C1     # cha_1_reshape = 16
LP1 = L1 // 2    # cha_po_1 = 8
LP2 = LP1 // 2   # 4
CHA_PO_2 = LP2 * C3   # 128
EPS = 1e-5
ALPHA = 0.06     # CELU alpha
NEG = -1e30
FEAT1 = C2 * L1      # 512  conv1a feature width
FEAT2 = C2 * LP1     # 256  conv1b/conv2 feature width (== C3 * LP1)


# ============================== fused forward kernel ===============================
def cnn_fused_kernel(x_ref, const_ref,
                     w0_hbm, t1_hbm, t2_hbm, t3_hbm, t4_hbm, u_hbm,
                     o_ref,
                     w0_v, t1_v, t2_v, t3_v, t4_v, u_v, sem):
    f32 = jnp.float32
    bf16 = jnp.bfloat16

    # ----- kick off all weight DMAs up front; wait just-in-time before each use -----
    srcs = (w0_hbm, t1_hbm, t2_hbm, t3_hbm, t4_hbm, u_hbm)
    dsts = (w0_v, t1_v, t2_v, t3_v, t4_v, u_v)
    copies = []
    for i, (s, d) in enumerate(zip(srcs, dsts)):
        cp = pltpu.make_async_copy(s, d, sem.at[i])
        cp.start()
        copies.append(cp)

    # ----- unpack the small-constant slab (rows: biases 0..5, masks 8..11) -----
    b0 = const_ref[0:1, 0:H]          # (1, 256)
    c1 = const_ref[1:2, 0:FEAT1]      # (1, 512)
    c2 = const_ref[2:3, 0:FEAT2]      # (1, 256)
    c3 = const_ref[3:4, 0:FEAT2]      # (1, 256)
    c4 = const_ref[4:5, 0:FEAT2]      # (1, 256)
    bout = const_ref[5:6, 0:128]      # (1, 128)
    m = const_ref[8:12, 0:FEAT2]      # (4, 256)  additive -inf pool boundary masks

    # ----- expand: BN0 (folded) + Linear + CELU(0.06) -----
    x = x_ref[...].astype(bf16)                                          # (B, F)
    copies[0].wait()
    h = jnp.dot(x, w0_v[...], preferred_element_type=f32) + b0
    h = jnp.where(h > 0.0, h,
                  ALPHA * (jnp.exp(jnp.minimum(h, 0.0) / ALPHA) - 1.0))  # (B, H)

    # ----- conv1 block: each layer is ONE matmul with a host-folded matrix -----
    copies[1].wait()
    a1 = jnp.maximum(jnp.dot(h.astype(bf16), t1_v[...],
                             preferred_element_type=f32) + c1, 0.0)      # (B, 512)
    copies[2].wait()
    x1 = jnp.maximum(jnp.dot(a1.astype(bf16), t2_v[...],
                             preferred_element_type=f32) + c2, 0.0)      # (B, 256)

    # ----- conv2 block (two_stage), then elementwise gate -----
    copies[3].wait()
    y = jnp.maximum(jnp.dot(x1.astype(bf16), t3_v[...],
                            preferred_element_type=f32) + c3, 0.0)
    copies[4].wait()
    y = jnp.maximum(jnp.dot(y.astype(bf16), t4_v[...],
                            preferred_element_type=f32) + c4, 0.0)       # (B, 256)
    x2 = y * x1                                                          # >= 0

    # ----- MaxPool1d(kernel=4, stride=2, padding=1) over length-LP1 lane segments -----
    # Windows are evaluated at every lane via full-width lane rolls + additive -inf
    # boundary masks; only even lanes are consumed by the folded head matrix below.
    win = x2                                                             # tap w = 0
    for row, w in ((0, -1), (2, 1), (3, 2)):
        shifted = pltpu.roll(x2, (-w) % FEAT2, 1)                        # lane roll (XLU)
        win = jnp.maximum(win, shifted + m[row:row + 1, :])

    # ----- stride-2 down-select + BN_d + Linear(cha_po_2 -> 1), folded into u_v.
    # Lane-dense (B, 128) output slab; the result lives in lane 0.
    copies[5].wait()
    o_ref[...] = (jnp.dot(win.astype(bf16), u_v[...],
                          preferred_element_type=f32) + bout)


# ================================ wrappers =========================================
def _vspec(shape):
    nd = len(shape)
    return pl.BlockSpec(shape, lambda *_i, _nd=nd: (0,) * _nd)


@jax.jit
def cnn_forward(x_num, cp):
    bf16 = jnp.bfloat16
    operands = (x_num, cp["consts"],
                cp["w0"], cp["t1"], cp["t2"], cp["t3"], cp["t4"], cp["u"])
    out = pl.pallas_call(
        cnn_fused_kernel,
        out_shape=jax.ShapeDtypeStruct((B, 128), jnp.float32),
        grid=(1,),
        in_specs=[
            _vspec((B, F)),                      # x   (auto-pipelined, tiny)
            _vspec((16, 512)),                   # packed small constants
            pl.BlockSpec(memory_space=pl.ANY),   # w0  -> manual DMA
            pl.BlockSpec(memory_space=pl.ANY),   # t1
            pl.BlockSpec(memory_space=pl.ANY),   # t2
            pl.BlockSpec(memory_space=pl.ANY),   # t3
            pl.BlockSpec(memory_space=pl.ANY),   # t4
            pl.BlockSpec(memory_space=pl.ANY),   # head
        ],
        out_specs=_vspec((B, 128)),
        scratch_shapes=[
            pltpu.VMEM((F, H), bf16),            # w0
            pltpu.VMEM((C1 * L1, FEAT1), bf16),  # t1
            pltpu.VMEM((FEAT1, FEAT2), bf16),    # t2
            pltpu.VMEM((FEAT2, FEAT2), bf16),    # t3
            pltpu.VMEM((FEAT2, FEAT2), bf16),    # t4
            pltpu.VMEM((FEAT2, 128), bf16),      # head
            pltpu.SemaphoreType.DMA((6,)),
        ],
        # NOTE(v7x): at this size one TensorCore is plenty; a 'parallel' batch-slab axis
        # only pays off with a multi-slab grid at much larger batch.
        compiler_params=pltpu.CompilerParams(dimension_semantics=("arbitrary",)),
    )(*operands)
    return out[:, 0]                         # (B,)  == torch.squeeze


# ===================== one-time host-side parameter folding =======================
def prepare_params(p):
    """Fold BN stats, weight_norm, pooling and the dense head into dense constants.

    Runs ONCE on the host in numpy (float64), outside the per-call jit.
    Big matrices are stored bf16 (halved DMA, single-pass MXU); small biases/masks f32.
    """
    def _np(a):
        return np.asarray(a, np.float64)

    def fold(bn):
        g, b, m, v = [_np(a) for a in bn]
        s = g / np.sqrt(v + EPS)
        return s, b - m * s

    def rep(v, n):
        return np.repeat(_np(v), n)

    def toeplitz(w, L, pad):
        # w: (Cout, Cin, K) torch conv weight.  Returns T (Cin*L, Cout*L) with
        # (x_flat @ T)[o*L + lo] = sum_{i,k} w[o,i,k] * x_flat[i*L + lo + k - pad]
        # (zero padding outside [0, L)).
        w = _np(w)
        Cout, Cin, K = w.shape
        T = np.zeros((Cin * L, Cout * L))
        for k in range(K):
            for lo in range(L):
                li = lo + k - pad
                if 0 <= li < L:
                    T[li::L, lo::L] = w[:, :, k].T
        return T

    s0, t0 = fold(p["bn0"])
    s1, t1 = fold(p["bn1"])
    s2, t2 = fold(p["bn2"])
    s3, t3 = fold(p["bn3"])
    s4, t4 = fold(p["bn4"])
    sd, td = fold(p["bn_d"])

    # expand: (x*s0 + t0) @ W^T + b  ->  x @ W0 + b0
    Wlin = _np(p["W_lin"])                              # (H, F)
    w0 = s0[:, None] * Wlin.T                           # (F, H)
    b0 = t0 @ Wlin.T + _np(p["b_lin"])                  # (H,)

    # conv1a (bias=False): BN1 scale into rows, BN1 shift into additive bias
    Toep1 = toeplitz(p["w1a"], L1, K1 // 2)             # (C1*L1, C2*L1)
    T1 = rep(s1, L1)[:, None] * Toep1
    c1 = rep(t1, L1) @ Toep1

    # AdaptiveAvgPool1d(L1 -> LP1) as a matrix, folded with BN2 + conv1b
    Pm = np.zeros((C2 * L1, C2 * LP1))
    for c in range(C2):
        for j in range(LP1):
            Pm[c * L1 + 2 * j, c * LP1 + j] = 0.5
            Pm[c * L1 + 2 * j + 1, c * LP1 + j] = 0.5
    Toep1b = toeplitz(p["w1b"], LP1, 1)                 # (C2*LP1, C2*LP1)
    T2 = Pm @ (rep(s2, LP1)[:, None] * Toep1b)          # (C2*L1, C2*LP1)
    c2 = rep(t2, LP1) @ Toep1b + rep(p["b1b"], LP1)

    # conv2 block
    Toep2a = toeplitz(p["w2a"], LP1, 1)
    T3 = rep(s3, LP1)[:, None] * Toep2a
    c3 = rep(t3, LP1) @ Toep2a + rep(p["b2a"], LP1)

    Toep2b = toeplitz(p["w2b"], LP1, 2)                 # (C2*LP1, C3*LP1)
    T4 = rep(s4, LP1)[:, None] * Toep2b
    c4 = rep(t4, LP1) @ Toep2b + rep(p["b2b"], LP1)

    # head: stride-2 down-select + BN_d + Linear folded into ONE (C3*LP1, 128) matrix
    Wd = _np(p["W_d"]).reshape(-1)                      # (CHA_PO_2,)
    uw = sd * Wd
    Ufull = np.zeros((C3 * LP1, 128))
    for c in range(C3):
        for j in range(LP2):
            Ufull[c * LP1 + 2 * j, 0] = uw[c * LP2 + j]

    # packed small-constant slab: rows 0..5 biases, rows 8..11 pool boundary masks
    consts = np.zeros((16, 512), np.float32)
    consts[0, :H] = b0
    consts[1, :FEAT1] = c1
    consts[2, :FEAT2] = c2
    consts[3, :FEAT2] = c3
    consts[4, :FEAT2] = c4
    consts[5, 0] = td @ Wd + _np(p["b_d"])[0]
    lane = np.arange(FEAT2) % LP1
    for idx, w in enumerate((-1, 0, 1, 2)):
        consts[8 + idx, :FEAT2] = np.where((lane + w >= 0) & (lane + w < LP1), 0.0, NEG)

    def bf(a):
        return jnp.asarray(np.asarray(a, np.float32), jnp.bfloat16)

    return dict(
        consts=jnp.asarray(consts),
        w0=bf(w0), t1=bf(T1), t2=bf(T2), t3=bf(T3), t4=bf(T4), u=bf(Ufull),
    )


# ============================ deterministic params =================================
def init_params(key):
    ks = iter(jax.random.split(key, 64))

    def nrm(shape, scale=0.15):
        return scale * jax.random.normal(next(ks), shape, jnp.float32)

    def bn(n):
        g = 1.0 + 0.1 * jax.random.normal(next(ks), (n,), jnp.float32)
        b = 0.1 * jax.random.normal(next(ks), (n,), jnp.float32)
        m = 0.1 * jax.random.normal(next(ks), (n,), jnp.float32)
        v = 0.5 + jax.random.uniform(next(ks), (n,), jnp.float32)
        return (g, b, m, v)

    return dict(
        bn0=bn(F), W_lin=nrm((H, F)), b_lin=nrm((H,), 0.1),
        bn1=bn(C1), w1a=nrm((C2, C1, K1)),
        bn2=bn(C2), w1b=nrm((C2, C2, 3)), b1b=nrm((C2,), 0.1),
        bn3=bn(C2), w2a=nrm((C2, C2, 3)), b2a=nrm((C2,), 0.1),
        bn4=bn(C2), w2b=nrm((C3, C2, 5)), b2b=nrm((C3,), 0.1),
        bn_d=bn(CHA_PO_2), W_d=nrm((1, CHA_PO_2)), b_d=nrm((1,), 0.1),
    )


# ============================ pure-numpy reference =================================
def _conv1d_np(x, w, b, pad):
    w = np.asarray(w, np.float64)
    Bn, Cin, L = x.shape
    Cout, _, K = w.shape
    xp = np.pad(x, ((0, 0), (0, 0), (pad, pad)))
    out = np.zeros((Bn, Cout, L))
    for k in range(K):
        out = out + np.einsum("bcl,oc->bol", xp[:, :, k:k + L], w[:, :, k])
    if b is not None:
        out = out + np.asarray(b, np.float64)[None, :, None]
    return out


def reference_forward(x, p):
    def fold(bn):
        g, b, m, v = [np.asarray(a, np.float64) for a in bn]
        s = g / np.sqrt(v + EPS)
        return s, b - m * s

    x = np.asarray(x, np.float64)
    s0, t0 = fold(p["bn0"])
    h = x * s0 + t0
    h = h @ np.asarray(p["W_lin"], np.float64).T + np.asarray(p["b_lin"], np.float64)
    h = np.where(h > 0, h, ALPHA * (np.exp(np.minimum(h, 0.0) / ALPHA) - 1.0))
    z = h.reshape(B, C1, L1)
    s1, t1 = fold(p["bn1"])
    z = np.maximum(_conv1d_np(z * s1[None, :, None] + t1[None, :, None],
                              p["w1a"], None, K1 // 2), 0.0)
    z = z.reshape(B, C2, LP1, 2).mean(-1)
    s2, t2 = fold(p["bn2"])
    z = np.maximum(_conv1d_np(z * s2[None, :, None] + t2[None, :, None],
                              p["w1b"], p["b1b"], 1), 0.0)
    s3, t3 = fold(p["bn3"])
    y = np.maximum(_conv1d_np(z * s3[None, :, None] + t3[None, :, None],
                              p["w2a"], p["b2a"], 1), 0.0)
    s4, t4 = fold(p["bn4"])
    y = np.maximum(_conv1d_np(y * s4[None, :, None] + t4[None, :, None],
                              p["w2b"], p["b2b"], 2), 0.0)
    z = y * z
    zp = np.pad(z, ((0, 0), (0, 0), (1, 1)), constant_values=NEG)
    z = np.stack([zp[:, :, 2 * j:2 * j + 4].max(-1) for j in range(LP2)], axis=-1)
    flat = z.reshape(B, CHA_PO_2)
    sd, td = fold(p["bn_d"])
    flat = flat * sd + td
    out = flat @ np.asarray(p["W_d"], np.float64).T + np.asarray(p["b_d"], np.float64)
    return out.reshape(B)


# ==================================== main =========================================
if __name__ == "__main__":
    key = jax.random.PRNGKey(0)
    kx, kp = jax.random.split(key)
    x_num = jax.random.normal(kx, (B, F), jnp.float32)
    params = init_params(kp)

    # one-time host-side constant folding (outside the per-call jit)
    consts = prepare_params(params)

    out = cnn_forward(x_num, consts)
    out = jax.block_until_ready(out)

    ref = reference_forward(np.asarray(x_num), {k: v for k, v in params.items()})
    # bf16 weights + bf16 activation casts at the dot boundaries (f32 accumulation)
    np.testing.assert_allclose(np.asarray(out), ref, rtol=4e-2, atol=4e-2)
    print("KERNEL_OK")
</pallas_src>

<mosaic_0001>
module attributes {stable_mosaic.version = 11 : i64} {
  func.func @cnn_fused_kernel(%arg0: i32, %arg1: memref<8x32xf32, #tpu.memory_space<vmem>>, %arg2: memref<16x512xf32, #tpu.memory_space<vmem>>, %arg3: memref<32x256xbf16, #tpu.memory_space<any>>, %arg4: memref<256x512xbf16, #tpu.memory_space<any>>, %arg5: memref<512x256xbf16, #tpu.memory_space<any>>, %arg6: memref<256x256xbf16, #tpu.memory_space<any>>, %arg7: memref<256x256xbf16, #tpu.memory_space<any>>, %arg8: memref<256x128xbf16, #tpu.memory_space<any>>, %arg9: memref<8x128xf32, #tpu.memory_space<vmem>>, %arg10: memref<32x256xbf16, #tpu.memory_space<vmem>>, %arg11: memref<256x512xbf16, #tpu.memory_space<vmem>>, %arg12: memref<512x256xbf16, #tpu.memory_space<vmem>>, %arg13: memref<256x256xbf16, #tpu.memory_space<vmem>>, %arg14: memref<256x256xbf16, #tpu.memory_space<vmem>>, %arg15: memref<256x128xbf16, #tpu.memory_space<vmem>>, %arg16: memref<6x!tpu.dma_semaphore, #tpu.memory_space<semaphore_mem>>) attributes {dimension_semantics = [#tpu.dimension_semantics<arbitrary>], iteration_bounds = array<i64: 1>, scalar_prefetch = 0 : i64, scratch_operands = 7 : i64, tpu.core_type = #tpu.core_type<tc>, window_params = [{pipeline_mode = #tpu.pipeline_mode<synchronous>, transform_indices = @transform_0, window_bounds = array<i64: 8, 32>}, {pipeline_mode = #tpu.pipeline_mode<synchronous>, transform_indices = @transform_1, window_bounds = array<i64: 16, 512>}, {}, {}, {}, {}, {}, {}, {pipeline_mode = #tpu.pipeline_mode<synchronous>, transform_indices = @transform_8, window_bounds = array<i64: 8, 128>}]} {
    %c0_i32 = arith.constant 0 : i32
    %0 = tpu.memref_slice %arg16[%c0_i32] : memref<6x!tpu.dma_semaphore, #tpu.memory_space<semaphore_mem>> -> memref<1x!tpu.dma_semaphore, #tpu.memory_space<semaphore_mem>>
    %1 = tpu.memref_squeeze %0 : memref<1x!tpu.dma_semaphore, #tpu.memory_space<semaphore_mem>> -> memref<!tpu.dma_semaphore, #tpu.memory_space<semaphore_mem>>
    tpu.enqueue_dma source(%arg3 : memref<32x256xbf16, #tpu.memory_space<any>>) target(%arg10 : memref<32x256xbf16, #tpu.memory_space<vmem>>) target_semaphore(%1 : memref<!tpu.dma_semaphore, #tpu.memory_space<semaphore_mem>>)
    %c1_i32 = arith.constant 1 : i32
    %2 = tpu.memref_slice %arg16[%c1_i32] : memref<6x!tpu.dma_semaphore, #tpu.memory_space<semaphore_mem>> -> memref<1x!tpu.dma_semaphore, #tpu.memory_space<semaphore_mem>>
    %3 = tpu.memref_squeeze %2 : memref<1x!tpu.dma_semaphore, #tpu.memory_space<semaphore_mem>> -> memref<!tpu.dma_semaphore, #tpu.memory_space<semaphore_mem>>
    tpu.enqueue_dma source(%arg4 : memref<256x512xbf16, #tpu.memory_space<any>>) target(%arg11 : memref<256x512xbf16, #tpu.memory_space<vmem>>) target_semaphore(%3 : memref<!tpu.dma_semaphore, #tpu.memory_space<semaphore_mem>>)
    %c2_i32 = arith.constant 2 : i32
    %4 = tpu.memref_slice %arg16[%c2_i32] : memref<6x!tpu.dma_semaphore, #tpu.memory_space<semaphore_mem>> -> memref<1x!tpu.dma_semaphore, #tpu.memory_space<semaphore_mem>>
    %5 = tpu.memref_squeeze %4 : memref<1x!tpu.dma_semaphore, #tpu.memory_space<semaphore_mem>> -> memref<!tpu.dma_semaphore, #tpu.memory_space<semaphore_mem>>
    tpu.enqueue_dma source(%arg5 : memref<512x256xbf16, #tpu.memory_space<any>>) target(%arg12 : memref<512x256xbf16, #tpu.memory_space<vmem>>) target_semaphore(%5 : memref<!tpu.dma_semaphore, #tpu.memory_space<semaphore_mem>>)
    %c3_i32 = arith.constant 3 : i32
    %6 = tpu.memref_slice %arg16[%c3_i32] : memref<6x!tpu.dma_semaphore, #tpu.memory_space<semaphore_mem>> -> memref<1x!tpu.dma_semaphore, #tpu.memory_space<semaphore_mem>>
    %7 = tpu.memref_squeeze %6 : memref<1x!tpu.dma_semaphore, #tpu.memory_space<semaphore_mem>> -> memref<!tpu.dma_semaphore, #tpu.memory_space<semaphore_mem>>
    tpu.enqueue_dma source(%arg6 : memref<256x256xbf16, #tpu.memory_space<any>>) target(%arg13 : memref<256x256xbf16, #tpu.memory_space<vmem>>) target_semaphore(%7 : memref<!tpu.dma_semaphore, #tpu.memory_space<semaphore_mem>>)
    %c4_i32 = arith.constant 4 : i32
    %8 = tpu.memref_slice %arg16[%c4_i32] : memref<6x!tpu.dma_semaphore, #tpu.memory_space<semaphore_mem>> -> memref<1x!tpu.dma_semaphore, #tpu.memory_space<semaphore_mem>>
    %9 = tpu.memref_squeeze %8 : memref<1x!tpu.dma_semaphore, #tpu.memory_space<semaphore_mem>> -> memref<!tpu.dma_semaphore, #tpu.memory_space<semaphore_mem>>
    tpu.enqueue_dma source(%arg7 : memref<256x256xbf16, #tpu.memory_space<any>>) target(%arg14 : memref<256x256xbf16, #tpu.memory_space<vmem>>) target_semaphore(%9 : memref<!tpu.dma_semaphore, #tpu.memory_space<semaphore_mem>>)
    %c5_i32 = arith.constant 5 : i32
    %10 = tpu.memref_slice %arg16[%c5_i32] : memref<6x!tpu.dma_semaphore, #tpu.memory_space<semaphore_mem>> -> memref<1x!tpu.dma_semaphore, #tpu.memory_space<semaphore_mem>>
    %11 = tpu.memref_squeeze %10 : memref<1x!tpu.dma_semaphore, #tpu.memory_space<semaphore_mem>> -> memref<!tpu.dma_semaphore, #tpu.memory_space<semaphore_mem>>
    tpu.enqueue_dma source(%arg8 : memref<256x128xbf16, #tpu.memory_space<any>>) target(%arg15 : memref<256x128xbf16, #tpu.memory_space<vmem>>) target_semaphore(%11 : memref<!tpu.dma_semaphore, #tpu.memory_space<semaphore_mem>>)
    %c0 = arith.constant 0 : index
    %c0_0 = arith.constant 0 : index
    %12 = vector.load %arg2[%c0, %c0_0] : memref<16x512xf32, #tpu.memory_space<vmem>>, vector<1x256xf32>
    %c1 = arith.constant 1 : index
    %c0_1 = arith.constant 0 : index
    %13 = vector.load %arg2[%c1, %c0_1] : memref<16x512xf32, #tpu.memory_space<vmem>>, vector<1x512xf32>
    %c2 = arith.constant 2 : index
    %c0_2 = arith.constant 0 : index
    %14 = vector.load %arg2[%c2, %c0_2] : memref<16x512xf32, #tpu.memory_space<vmem>>, vector<1x256xf32>
    %c3 = arith.constant 3 : index
    %c0_3 = arith.constant 0 : index
    %15 = vector.load %arg2[%c3, %c0_3] : memref<16x512xf32, #tpu.memory_space<vmem>>, vector<1x256xf32>
    %c4 = arith.constant 4 : index
    %c0_4 = arith.constant 0 : index
    %16 = vector.load %arg2[%c4, %c0_4] : memref<16x512xf32, #tpu.memory_space<vmem>>, vector<1x256xf32>
    %c5 = arith.constant 5 : index
    %c0_5 = arith.constant 0 : index
    %17 = vector.load %arg2[%c5, %c0_5] : memref<16x512xf32, #tpu.memory_space<vmem>>, vector<1x128xf32>
    %c8 = arith.constant 8 : index
    %c0_6 = arith.constant 0 : index
    %18 = vector.load %arg2[%c8, %c0_6] : memref<16x512xf32, #tpu.memory_space<vmem>>, vector<4x256xf32>
    %c0_7 = arith.constant 0 : index
    %c0_8 = arith.constant 0 : index
    %19 = vector.load %arg1[%c0_7, %c0_8] : memref<8x32xf32, #tpu.memory_space<vmem>>, vector<8x32xf32>
    %20 = arith.truncf %19 : vector<8x32xf32> to vector<8x32xbf16>
    %c0_i32_9 = arith.constant 0 : i32
    %21 = tpu.memref_slice %arg16[%c0_i32_9] : memref<6x!tpu.dma_semaphore, #tpu.memory_space<semaphore_mem>> -> memref<1x!tpu.dma_semaphore, #tpu.memory_space<semaphore_mem>>
    %22 = tpu.memref_squeeze %21 : memref<1x!tpu.dma_semaphore, #tpu.memory_space<semaphore_mem>> -> memref<!tpu.dma_semaphore, #tpu.memory_space<semaphore_mem>>
    tpu.wait_dma2 semaphore(%22 : memref<!tpu.dma_semaphore, #tpu.memory_space<semaphore_mem>>) src(%arg3 : memref<32x256xbf16, #tpu.memory_space<any>>) dst(%arg10 : memref<32x256xbf16, #tpu.memory_space<vmem>>)
    %c0_10 = arith.constant 0 : index
    %c0_11 = arith.constant 0 : index
    %23 = vector.load %arg10[%c0_10, %c0_11] : memref<32x256xbf16, #tpu.memory_space<vmem>>, vector<32x256xbf16>
    %cst = arith.constant dense<0.000000e+00> : vector<8x256xf32>
    %24 = tpu.matmul %20, %23, %cst {dimension_numbers = #tpu.dot_dimension_numbers<[1], [0], [0], [1], [0, 0, 1, 1], [], []>} : vector<8x32xbf16>, vector<32x256xbf16>, vector<8x256xf32> -> vector<8x256xf32>
    %25 = vector.broadcast %12 : vector<1x256xf32> to vector<8x256xf32>
    %26 = arith.addf %24, %25 : vector<8x256xf32>
    %cst_12 = arith.constant 0.000000e+00 : f32
    %27 = vector.broadcast %cst_12 : f32 to vector<8x256xf32>
    %28 = arith.cmpf ogt, %26, %27 : vector<8x256xf32>
    %cst_13 = arith.constant 0.000000e+00 : f32
    %29 = vector.broadcast %cst_13 : f32 to vector<8x256xf32>
    %30 = arith.minimumf %26, %29 : vector<8x256xf32>
    %cst_14 = arith.constant 6.000000e-02 : f32
    %31 = vector.broadcast %cst_14 : f32 to vector<8x256xf32>
    %32 = arith.divf %30, %31 : vector<8x256xf32>
    %33 = math.exp %32 : vector<8x256xf32>
    %cst_15 = arith.constant 1.000000e+00 : f32
    %34 = vector.broadcast %cst_15 : f32 to vector<8x256xf32>
    %35 = arith.subf %33, %34 : vector<8x256xf32>
    %cst_16 = arith.constant 6.000000e-02 : f32
    %36 = vector.broadcast %cst_16 : f32 to vector<8x256xf32>
    %37 = arith.mulf %36, %35 : vector<8x256xf32>
    %38 = arith.select %28, %26, %37 : vector<8x256xi1>, vector<8x256xf32>
    %c1_i32_17 = arith.constant 1 : i32
    %39 = tpu.memref_slice %arg16[%c1_i32_17] : memref<6x!tpu.dma_semaphore, #tpu.memory_space<semaphore_mem>> -> memref<1x!tpu.dma_semaphore, #tpu.memory_space<semaphore_mem>>
    %40 = tpu.memref_squeeze %39 : memref<1x!tpu.dma_semaphore, #tpu.memory_space<semaphore_mem>> -> memref<!tpu.dma_semaphore, #tpu.memory_space<semaphore_mem>>
    tpu.wait_dma2 semaphore(%40 : memref<!tpu.dma_semaphore, #tpu.memory_space<semaphore_mem>>) src(%arg4 : memref<256x512xbf16, #tpu.memory_space<any>>) dst(%arg11 : memref<256x512xbf16, #tpu.memory_space<vmem>>)
    %41 = arith.truncf %38 : vector<8x256xf32> to vector<8x256xbf16>
    %c0_18 = arith.constant 0 : index
    %c0_19 = arith.constant 0 : index
    %42 = vector.load %arg11[%c0_18, %c0_19] : memref<256x512xbf16, #tpu.memory_space<vmem>>, vector<256x512xbf16>
    %cst_20 = arith.constant dense<0.000000e+00> : vector<8x512xf32>
    %43 = tpu.matmul %41, %42, %cst_20 {dimension_numbers = #tpu.dot_dimension_numbers<[1], [0], [0], [1], [0, 0, 1, 1], [], []>} : vector<8x256xbf16>, vector<256x512xbf16>, vector<8x512xf32> -> vector<8x512xf32>
    %44 = vector.broadcast %13 : vector<1x512xf32> to vector<8x512xf32>
    %45 = arith.addf %43, %44 : vector<8x512xf32>
    %cst_21 = arith.constant 0.000000e+00 : f32
    %46 = vector.broadcast %cst_21 : f32 to vector<8x512xf32>
    %47 = arith.maximumf %45, %46 : vector<8x512xf32>
    %c2_i32_22 = arith.constant 2 : i32
    %48 = tpu.memref_slice %arg16[%c2_i32_22] : memref<6x!tpu.dma_semaphore, #tpu.memory_space<semaphore_mem>> -> memref<1x!tpu.dma_semaphore, #tpu.memory_space<semaphore_mem>>
    %49 = tpu.memref_squeeze %48 : memref<1x!tpu.dma_semaphore, #tpu.memory_space<semaphore_mem>> -> memref<!tpu.dma_semaphore, #tpu.memory_space<semaphore_mem>>
    tpu.wait_dma2 semaphore(%49 : memref<!tpu.dma_semaphore, #tpu.memory_space<semaphore_mem>>) src(%arg5 : memref<512x256xbf16, #tpu.memory_space<any>>) dst(%arg12 : memref<512x256xbf16, #tpu.memory_space<vmem>>)
    %50 = arith.truncf %47 : vector<8x512xf32> to vector<8x512xbf16>
    %c0_23 = arith.constant 0 : index
    %c0_24 = arith.constant 0 : index
    %51 = vector.load %arg12[%c0_23, %c0_24] : memref<512x256xbf16, #tpu.memory_space<vmem>>, vector<512x256xbf16>
    %cst_25 = arith.constant dense<0.000000e+00> : vector<8x256xf32>
    %52 = tpu.matmul %50, %51, %cst_25 {dimension_numbers = #tpu.dot_dimension_numbers<[1], [0], [0], [1], [0, 0, 1, 1], [], []>} : vector<8x512xbf16>, vector<512x256xbf16>, vector<8x256xf32> -> vector<8x256xf32>
    %53 = vector.broadcast %14 : vector<1x256xf32> to vector<8x256xf32>
    %54 = arith.addf %52, %53 : vector<8x256xf32>
    %cst_26 = arith.constant 0.000000e+00 : f32
    %55 = vector.broadcast %cst_26 : f32 to vector<8x256xf32>
    %56 = arith.maximumf %54, %55 : vector<8x256xf32>
    %c3_i32_27 = arith.constant 3 : i32
    %57 = tpu.memref_slice %arg16[%c3_i32_27] : memref<6x!tpu.dma_semaphore, #tpu.memory_space<semaphore_mem>> -> memref<1x!tpu.dma_semaphore, #tpu.memory_space<semaphore_mem>>
    %58 = tpu.memref_squeeze %57 : memref<1x!tpu.dma_semaphore, #tpu.memory_space<semaphore_mem>> -> memref<!tpu.dma_semaphore, #tpu.memory_space<semaphore_mem>>
    tpu.wait_dma2 semaphore(%58 : memref<!tpu.dma_semaphore, #tpu.memory_space<semaphore_mem>>) src(%arg6 : memref<256x256xbf16, #tpu.memory_space<any>>) dst(%arg13 : memref<256x256xbf16, #tpu.memory_space<vmem>>)
    %59 = arith.truncf %56 : vector<8x256xf32> to vector<8x256xbf16>
    %c0_28 = arith.constant 0 : index
    %c0_29 = arith.constant 0 : index
    %60 = vector.load %arg13[%c0_28, %c0_29] : memref<256x256xbf16, #tpu.memory_space<vmem>>, vector<256x256xbf16>
    %cst_30 = arith.constant dense<0.000000e+00> : vector<8x256xf32>
    %61 = tpu.matmul %59, %60, %cst_30 {dimension_numbers = #tpu.dot_dimension_numbers<[1], [0], [0], [1], [0, 0, 1, 1], [], []>} : vector<8x256xbf16>, vector<256x256xbf16>, vector<8x256xf32> -> vector<8x256xf32>
    %62 = vector.broadcast %15 : vector<1x256xf32> to vector<8x256xf32>
    %63 = arith.addf %61, %62 : vector<8x256xf32>
    %cst_31 = arith.constant 0.000000e+00 : f32
    %64 = vector.broadcast %cst_31 : f32 to vector<8x256xf32>
    %65 = arith.maximumf %63, %64 : vector<8x256xf32>
    %c4_i32_32 = arith.constant 4 : i32
    %66 = tpu.memref_slice %arg16[%c4_i32_32] : memref<6x!tpu.dma_semaphore, #tpu.memory_space<semaphore_mem>> -> memref<1x!tpu.dma_semaphore, #tpu.memory_space<semaphore_mem>>
    %67 = tpu.memref_squeeze %66 : memref<1x!tpu.dma_semaphore, #tpu.memory_space<semaphore_mem>> -> memref<!tpu.dma_semaphore, #tpu.memory_space<semaphore_mem>>
    tpu.wait_dma2 semaphore(%67 : memref<!tpu.dma_semaphore, #tpu.memory_space<semaphore_mem>>) src(%arg7 : memref<256x256xbf16, #tpu.memory_space<any>>) dst(%arg14 : memref<256x256xbf16, #tpu.memory_space<vmem>>)
    %68 = arith.truncf %65 : vector<8x256xf32> to vector<8x256xbf16>
    %c0_33 = arith.constant 0 : index
    %c0_34 = arith.constant 0 : index
    %69 = vector.load %arg14[%c0_33, %c0_34] : memref<256x256xbf16, #tpu.memory_space<vmem>>, vector<256x256xbf16>
    %cst_35 = arith.constant dense<0.000000e+00> : vector<8x256xf32>
    %70 = tpu.matmul %68, %69, %cst_35 {dimension_numbers = #tpu.dot_dimension_numbers<[1], [0], [0], [1], [0, 0, 1, 1], [], []>} : vector<8x256xbf16>, vector<256x256xbf16>, vector<8x256xf32> -> vector<8x256xf32>
    %71 = vector.broadcast %16 : vector<1x256xf32> to vector<8x256xf32>
    %72 = arith.addf %70, %71 : vector<8x256xf32>
    %cst_36 = arith.constant 0.000000e+00 : f32
    %73 = vector.broadcast %cst_36 : f32 to vector<8x256xf32>
    %74 = arith.maximumf %72, %73 : vector<8x256xf32>
    %75 = arith.mulf %74, %56 : vector<8x256xf32>
    %c1_i32_37 = arith.constant 1 : i32
    %76 = tpu.dynamic_rotate %75 by %c1_i32_37 dim 1 : vector<8x256xf32>, i32 -> vector<8x256xf32>
    %77 = vector.extract_strided_slice %18 {offsets = [0, 0], sizes = [1, 256], strides = [1, 1]} : vector<4x256xf32> to vector<1x256xf32>
    %78 = vector.broadcast %77 : vector<1x256xf32> to vector<8x256xf32>
    %79 = arith.addf %76, %78 : vector<8x256xf32>
    %80 = arith.maximumf %75, %79 : vector<8x256xf32>
    %c255_i32 = arith.constant 255 : i32
    %81 = tpu.dynamic_rotate %75 by %c255_i32 dim 1 : vector<8x256xf32>, i32 -> vector<8x256xf32>
    %82 = vector.extract_strided_slice %18 {offsets = [2, 0], sizes = [1, 256], strides = [1, 1]} : vector<4x256xf32> to vector<1x256xf32>
    %83 = vector.broadcast %82 : vector<1x256xf32> to vector<8x256xf32>
    %84 = arith.addf %81, %83 : vector<8x256xf32>
    %85 = arith.maximumf %80, %84 : vector<8x256xf32>
    %c254_i32 = arith.constant 254 : i32
    %86 = tpu.dynamic_rotate %75 by %c254_i32 dim 1 : vector<8x256xf32>, i32 -> vector<8x256xf32>
    %87 = vector.extract_strided_slice %18 {offsets = [3, 0], sizes = [1, 256], strides = [1, 1]} : vector<4x256xf32> to vector<1x256xf32>
    %88 = vector.broadcast %87 : vector<1x256xf32> to vector<8x256xf32>
    %89 = arith.addf %86, %88 : vector<8x256xf32>
    %90 = arith.maximumf %85, %89 : vector<8x256xf32>
    %c5_i32_38 = arith.constant 5 : i32
    %91 = tpu.memref_slice %arg16[%c5_i32_38] : memref<6x!tpu.dma_semaphore, #tpu.memory_space<semaphore_mem>> -> memref<1x!tpu.dma_semaphore, #tpu.memory_space<semaphore_mem>>
    %92 = tpu.memref_squeeze %91 : memref<1x!tpu.dma_semaphore, #tpu.memory_space<semaphore_mem>> -> memref<!tpu.dma_semaphore, #tpu.memory_space<semaphore_mem>>
    tpu.wait_dma2 semaphore(%92 : memref<!tpu.dma_semaphore, #tpu.memory_space<semaphore_mem>>) src(%arg8 : memref<256x128xbf16, #tpu.memory_space<any>>) dst(%arg15 : memref<256x128xbf16, #tpu.memory_space<vmem>>)
    %93 = arith.truncf %90 : vector<8x256xf32> to vector<8x256xbf16>
    %c0_39 = arith.constant 0 : index
    %c0_40 = arith.constant 0 : index
    %94 = vector.load %arg15[%c0_39, %c0_40] : memref<256x128xbf16, #tpu.memory_space<vmem>>, vector<256x128xbf16>
    %cst_41 = arith.constant dense<0.000000e+00> : vector<8x128xf32>
    %95 = tpu.matmul %93, %94, %cst_41 {dimension_numbers = #tpu.dot_dimension_numbers<[1], [0], [0], [1], [0, 0, 1, 1], [], []>} : vector<8x256xbf16>, vector<256x128xbf16>, vector<8x128xf32> -> vector<8x128xf32>
    %96 = vector.broadcast %17 : vector<1x128xf32> to vector<8x128xf32>
    %97 = arith.addf %95, %96 : vector<8x128xf32>
    %c0_42 = arith.constant 0 : index
    %c0_43 = arith.constant 0 : index
    %98 = vector.load %arg9[%c0_42, %c0_43] : memref<8x128xf32, #tpu.memory_space<vmem>>, vector<8x128xf32>
    tpu.vector_store %arg9[%c0_42, %c0_43], %97 {strides = array<i32>} : memref<8x128xf32, #tpu.memory_space<vmem>>, vector<8x128xf32>,
    return
  }
  func.func @transform_0(%arg0: i32) -> (i32, i32) {
    %c0_i32 = arith.constant 0 : i32
    %c0_i32_0 = arith.constant 0 : i32
    %c0_i32_1 = arith.constant 0 : i32
    return %c0_i32, %c0_i32_0 : i32, i32
  }
  func.func @transform_1(%arg0: i32) -> (i32, i32) {
    %c0_i32 = arith.constant 0 : i32
    %c0_i32_0 = arith.constant 0 : i32
    %c0_i32_1 = arith.constant 0 : i32
    return %c0_i32, %c0_i32_0 : i32, i32
  }
  func.func @transform_8(%arg0: i32) -> (i32, i32) {
    %c0_i32 = arith.constant 0 : i32
    %c0_i32_0 = arith.constant 0 : i32
    %c0_i32_1 = arith.constant 0 : i32
    return %c0_i32, %c0_i32_0 : i32, i32
  }
}

</mosaic_0001>

<llo_original>
// kernel: cnn_forward.1
$region0: #{cnn_forward.1}
  #allocation0 [shape = 'u32[]', space=smem, size = 0x4, offset = 0x4, fixed_abs, tag = 'smem constant byte address 0x4 - core index']
  #allocation1 [shape = 'u32[144,128]{1,0:T(1,128)}', space=vmem, size = 0x12000, scoped, tag = 'internal scratch']
  #allocation2 [shape = 'bf16[32,256]{1,0:T(16,128)(2,1)}', space=vmem, size = 0x4000, scoped, tag = 'scratch operand']
  #allocation3 [shape = 'bf16[256,512]{1,0:T(16,128)(2,1)}', space=vmem, size = 0x40000, scoped, tag = 'scratch operand']
  #allocation4 [shape = 'bf16[512,256]{1,0:T(16,128)(2,1)}', space=vmem, size = 0x40000, scoped, tag = 'scratch operand']
  #allocation5 [shape = 'bf16[256,256]{1,0:T(16,128)(2,1)}', space=vmem, size = 0x20000, scoped, tag = 'scratch operand']
  #allocation6 [shape = 'bf16[256,256]{1,0:T(16,128)(2,1)}', space=vmem, size = 0x20000, scoped, tag = 'scratch operand']
  #allocation7 [shape = 'bf16[256,128]{1,0:T(16,128)(2,1)}', space=vmem, size = 0x10000, scoped, tag = 'scratch operand']
  #allocation8 [shape = 's32[6]{0}', space=sflag, size = 0x18, scoped, tag = 'scratch operand']
  #allocation13 [shape = 's32[]', space=sflag, size = 0x4, offset = 0, fixed_abs, tag = 'sflag constant byte address 0x0 - dummy sync flag']
  #allocation15 [shape = 's32[]', space=sflag, size = 0x4, offset = 0, fixed_abs, tag = 'sflag constant byte address 0x0 - dummy sync flag']
  #allocation17 [shape = 's32[]', space=sflag, size = 0x4, offset = 0, fixed_abs, tag = 'sflag constant byte address 0x0 - dummy sync flag']
  #allocation19 [shape = 's32[]', space=sflag, size = 0x4, offset = 0, fixed_abs, tag = 'sflag constant byte address 0x0 - dummy sync flag']
  #allocation21 [shape = 's32[]', space=sflag, size = 0x4, offset = 0, fixed_abs, tag = 'sflag constant byte address 0x0 - dummy sync flag']
  #allocation23 [shape = 's32[]', space=sflag, size = 0x4, offset = 0, fixed_abs, tag = 'sflag constant byte address 0x0 - dummy sync flag']
  #allocation24 [shape = 's32[]', space=sflag, size = 0x4, offset = 0, fixed_abs, tag = 'sflag constant byte address 0x0 - dummy sync flag']
  #allocation25 [shape = 'u32[]', space=smem, size = 0x4, offset = 0x44, fixed_abs, tag = 'smem constant byte address 0x44 - assertion arg 0']
  #allocation26 [shape = 'u32[]', space=smem, size = 0x4, offset = 0x48, fixed_abs, tag = 'smem constant byte address 0x48 - assertion arg 1']
  %s0 = inlined_call_operand.hbm [shape: f32[8,32], index: 0, kind: input, shape index: {}]
  %s1 = inlined_call_operand.hbm [shape: f32[16,512], index: 1, kind: input, shape index: {}]
  %s2 = inlined_call_operand.hbm [shape: bf16[32,256], index: 2, kind: input, shape index: {}]
  %s3 = inlined_call_operand.hbm [shape: bf16[256,512], index: 3, kind: input, shape index: {}]
  %s4 = inlined_call_operand.hbm [shape: bf16[512,256], index: 4, kind: input, shape index: {}]
  %s5 = inlined_call_operand.hbm [shape: bf16[256,256], index: 5, kind: input, shape index: {}]
  %s6 = inlined_call_operand.hbm [shape: bf16[256,256], index: 6, kind: input, shape index: {}]
  %s7 = inlined_call_operand.hbm [shape: bf16[256,128], index: 7, kind: input, shape index: {}]
  %s8 = inlined_call_operand.vmem [shape: f32[8,128], index: 8, kind: output, shape index: {}]
  %s9 = sld [smem:[#allocation0]]
  $region30: #{cnn_forward.1} parent=0
    _
  %s11 = ssub.s32 1, %s9
  %s12 = scalar_select 0, %s11, %s9
  $region1: #{cnn_forward.1} parent=0
    #allocation9 [shape = 'u8[4096]{0}', space=vmem, size = 0x1000, scoped, tag = 'input window, operand 0, single buffered']
    #allocation10 [shape = 's32[1]{0}', space=sflag, size = 0x4, scoped, tag = 'scoped memory for cnn_forward.1']
    #allocation11 [shape = 'u8[32768]{0}', space=vmem, size = 0x8000, scoped, tag = 'input window, operand 1, single buffered']
    #allocation12 [shape = 's32[1]{0}', space=sflag, size = 0x4, scoped, tag = 'scoped memory for cnn_forward.1']
    #allocation14 [shape = 'u32[9]{0}', space=smem, size = 0x24, scoped, tag = 'DMA stride descriptor']
    #allocation16 [shape = 'u32[9]{0}', space=smem, size = 0x24, scoped, tag = 'DMA stride descriptor']
    #allocation18 [shape = 'u32[9]{0}', space=smem, size = 0x24, scoped, tag = 'DMA stride descriptor']
    #allocation20 [shape = 'u32[9]{0}', space=smem, size = 0x24, scoped, tag = 'DMA stride descriptor']
    #allocation22 [shape = 'u32[9]{0}', space=smem, size = 0x24, scoped, tag = 'DMA stride descriptor']
    %13 = vsyncpa [#allocation10], 0
    %14 = vsyncpa [#allocation12], 0
    // Predicated region
    $region2: #{cnn_forward.1} parent=1 // pred_check
      _
    $region3: #{cnn_forward.1} parent=1 // pred_check_branch
      %16 = sbr.rel (0) target = $region5
    $region4: #{cnn_forward.1} parent=1 // pred_region
      %s18 = ssub.s32 128, 128
      %19 = vsyncadd [#allocation10], %s18
      %s21 = sshll.u32 [#allocation9], 4
      %s22 = int_to_ptr.vmem [resolvable:$true] %s21
      %24 = dma.hbm_to_vmem [thread:$0]  %s0, 128, %s22, [#allocation10]
    $region5: #{cnn_forward.1} parent=1 // pred_fallthru
      _
    // Predicated region
    $region6: #{cnn_forward.1} parent=1 // pred_check
      _
    $region7: #{cnn_forward.1} parent=1 // pred_check_branch
      %26 = sbr.rel (0) target = $region9
    $region8: #{cnn_forward.1} parent=1 // pred_region
      %s28 = ssub.s32 1024, 1024
      %29 = vsyncadd [#allocation12], %s28
      %s30 = sshll.u32 [#allocation11], 4
      %s31 = int_to_ptr.vmem [resolvable:$true] %s30
      %36 = dma.hbm_to_vmem [thread:$0]  %s1, 1024, %s31, [#allocation12], 512, 512, 32
    $region9: #{cnn_forward.1} parent=1 // pred_fallthru
      _
    // Predicated region
    $region10: #{cnn_forward.1} parent=1 // pred_check
      _
    $region11: #{cnn_forward.1} parent=1 // pred_check_branch
      %38 = sbr.rel (0) target = $region13
    $region12: #{cnn_forward.1} parent=1 // pred_region
      %39 = dma.done [#allocation10], 128
    $region13: #{cnn_forward.1} parent=1 // pred_fallthru
      _
    // Predicated region
    $region14: #{cnn_forward.1} parent=1 // pred_check
      _
    $region15: #{cnn_forward.1} parent=1 // pred_check_branch
      %41 = sbr.rel (0) target = $region17
    $region16: #{cnn_forward.1} parent=1 // pred_region
      %42 = dma.done [#allocation12], 1024
    $region17: #{cnn_forward.1} parent=1 // pred_fallthru
      _
    %s45 = sshll.u32 1, 14
    %s46 = sxor.u32 4294967295, %s45
    %s48 = sld [smem:[#allocation0]]
    %s49 = sadd.s32 2, %s48
    %s51 = sshll.u32 7, 26
    %s52 = sxor.u32 4294967295, %s51
    %s53 = sand.u32 0, %s52
    %s54 = sshll.u32 %s49, 26
    %s55 = sor.u32 %s53, %s54
    %s56 = sshll.u32 [#allocation2], 4
    %s57 = int_to_ptr.vmem [resolvable:$true] %s56
    %60 = sst [smem:[#allocation14]] 256
    %s61 = scalar_lea.smem [#allocation14], 1
    %62 = sst [smem:[%s61]] 256
    %s63 = scalar_lea.smem [#allocation14], 2
    %64 = sst [smem:[%s63]] 2
    %s65 = scalar_lea.smem [#allocation14], 3
    %66 = sst [smem:[%s65]] 64
    %s67 = scalar_lea.smem [#allocation14], 4
    %68 = sst [smem:[%s67]] 128
    %s69 = scalar_lea.smem [#allocation14], 5
    %70 = sst [smem:[%s69]] 2
    %s71 = scalar_lea.smem [#allocation14], 6
    %72 = sst [smem:[%s71]] 128
    %s73 = scalar_lea.smem [#allocation14], 7
    %74 = sst [smem:[%s73]] 64
    %s75 = scalar_lea.smem [#allocation14], 8
    %76 = sst [smem:[%s75]] 4
    %78 = dma.general %s2, 512, %s57, [#allocation8], [#allocation13], [#allocation14], %s55, 0
    %s79 = scalar_lea.sflag [#allocation8], 1
    %s81 = sshll.u32 1, 14
    %s82 = sxor.u32 4294967295, %s81
    %s84 = sadd.s32 2, %s48
    %s86 = sshll.u32 7, 26
    %s87 = sxor.u32 4294967295, %s86
    %s88 = sand.u32 0, %s87
    %s89 = sshll.u32 %s84, 26
    %s90 = sor.u32 %s88, %s89
    %s91 = sshll.u32 [#allocation3], 4
    %s92 = int_to_ptr.vmem [resolvable:$true] %s91
    %95 = sst [smem:[#allocation16]] 512
    %s96 = scalar_lea.smem [#allocation16], 1
    %97 = sst [smem:[%s96]] 512
    %s98 = scalar_lea.smem [#allocation16], 2
    %99 = sst [smem:[%s98]] 4
    %s100 = scalar_lea.smem [#allocation16], 3
    %101 = sst [smem:[%s100]] 64
    %s102 = scalar_lea.smem [#allocation16], 4
    %103 = sst [smem:[%s102]] 128
    %s104 = scalar_lea.smem [#allocation16], 5
    %105 = sst [smem:[%s104]] 2
    %s106 = scalar_lea.smem [#allocation16], 6
    %107 = sst [smem:[%s106]] 256
    %s108 = scalar_lea.smem [#allocation16], 7
    %109 = sst [smem:[%s108]] 64
    %s110 = scalar_lea.smem [#allocation16], 8
    %111 = sst [smem:[%s110]] 4
    %113 = dma.general %s3, 8192, %s92, %s79, [#allocation15], [#allocation16], %s90, 0
    %s114 = scalar_lea.sflag [#allocation8], 2
    %s116 = sshll.u32 1, 14
    %s117 = sxor.u32 4294967295, %s116
    %s119 = sadd.s32 2, %s48
    %s121 = sshll.u32 7, 26
    %s122 = sxor.u32 4294967295, %s121
    %s123 = sand.u32 0, %s122
    %s124 = sshll.u32 %s119, 26
    %s125 = sor.u32 %s123, %s124
    %s126 = sshll.u32 [#allocation4], 4
    %s127 = int_to_ptr.vmem [resolvable:$true] %s126
    %130 = sst [smem:[#allocation18]] 256
    %s131 = scalar_lea.smem [#allocation18], 1
    %132 = sst [smem:[%s131]] 256
    %s133 = scalar_lea.smem [#allocation18], 2
    %134 = sst [smem:[%s133]] 2
    %s135 = scalar_lea.smem [#allocation18], 3
    %136 = sst [smem:[%s135]] 64
    %s137 = scalar_lea.smem [#allocation18], 4
    %138 = sst [smem:[%s137]] 128
    %s139 = scalar_lea.smem [#allocation18], 5
    %140 = sst [smem:[%s139]] 2
    %s141 = scalar_lea.smem [#allocation18], 6
    %142 = sst [smem:[%s141]] 128
    %s143 = scalar_lea.smem [#allocation18], 7
    %144 = sst [smem:[%s143]] 64
    %s145 = scalar_lea.smem [#allocation18], 8
    %146 = sst [smem:[%s145]] 4
    %148 = dma.general %s4, 8192, %s127, %s114, [#allocation17], [#allocation18], %s125, 0
    %s149 = scalar_lea.sflag [#allocation8], 3
    %s151 = sshll.u32 1, 14
    %s152 = sxor.u32 4294967295, %s151
    %s154 = sadd.s32 2, %s48
    %s156 = sshll.u32 7, 26
    %s157 = sxor.u32 4294967295, %s156
    %s158 = sand.u32 0, %s157
    %s159 = sshll.u32 %s154, 26
    %s160 = sor.u32 %s158, %s159
    %s161 = sshll.u32 [#allocation5], 4
    %s162 = int_to_ptr.vmem [resolvable:$true] %s161
    %165 = sst [smem:[#allocation20]] 256
    %s166 = scalar_lea.smem [#allocation20], 1
    %167 = sst [smem:[%s166]] 256
    %s168 = scalar_lea.smem [#allocation20], 2
    %169 = sst [smem:[%s168]] 2
    %s170 = scalar_lea.smem [#allocation20], 3
    %171 = sst [smem:[%s170]] 64
    %s172 = scalar_lea.smem [#allocation20], 4
    %173 = sst [smem:[%s172]] 128
    %s174 = scalar_lea.smem [#allocation20], 5
    %175 = sst [smem:[%s174]] 2
    %s176 = scalar_lea.smem [#allocation20], 6
    %177 = sst [smem:[%s176]] 128
    %s178 = scalar_lea.smem [#allocation20], 7
    %179 = sst [smem:[%s178]] 64
    %s180 = scalar_lea.smem [#allocation20], 8
    %181 = sst [smem:[%s180]] 4
    %183 = dma.general %s5, 4096, %s162, %s149, [#allocation19], [#allocation20], %s160, 0
    %s184 = scalar_lea.sflag [#allocation8], 4
    %s186 = sshll.u32 1, 14
    %s187 = sxor.u32 4294967295, %s186
    %s189 = sadd.s32 2, %s48
    %s191 = sshll.u32 7, 26
    %s192 = sxor.u32 4294967295, %s191
    %s193 = sand.u32 0, %s192
    %s194 = sshll.u32 %s189, 26
    %s195 = sor.u32 %s193, %s194
    %s196 = sshll.u32 [#allocation6], 4
    %s197 = int_to_ptr.vmem [resolvable:$true] %s196
    %200 = sst [smem:[#allocation22]] 256
    %s201 = scalar_lea.smem [#allocation22], 1
    %202 = sst [smem:[%s201]] 256
    %s203 = scalar_lea.smem [#allocation22], 2
    %204 = sst [smem:[%s203]] 2
    %s205 = scalar_lea.smem [#allocation22], 3
    %206 = sst [smem:[%s205]] 64
    %s207 = scalar_lea.smem [#allocation22], 4
    %208 = sst [smem:[%s207]] 128
    %s209 = scalar_lea.smem [#allocation22], 5
    %210 = sst [smem:[%s209]] 2
    %s211 = scalar_lea.smem [#allocation22], 6
    %212 = sst [smem:[%s211]] 128
    %s213 = scalar_lea.smem [#allocation22], 7
    %214 = sst [smem:[%s213]] 64
    %s215 = scalar_lea.smem [#allocation22], 8
    %216 = sst [smem:[%s215]] 4
    %218 = dma.general %s6, 4096, %s197, %s184, [#allocation21], [#allocation22], %s195, 0
    %s219 = scalar_lea.sflag [#allocation8], 5
    // Predicated region
    $region18: #{cnn_forward.1} parent=1 // pred_check
      _
    $region19: #{cnn_forward.1} parent=1 // pred_check_branch
      %221 = sbr.rel target = $region21
    $region20: #{cnn_forward.1} parent=1 // pred_region
      %222 = sst [smem:[#allocation25]] [#allocation24]
      %223 = sst [smem:[#allocation26]] [#allocation23]
    $region21: #{cnn_forward.1} parent=1 // pred_fallthru
      _
    %225 = shalt.err (0)
    %s227 = sshll.u32 [#allocation7], 4
    %s228 = int_to_ptr.vmem [resolvable:$true] %s227
    %230 = dma.hbm_to_vmem [thread:$0]  %s7, 2048, %s228, %s219
    %v231 = vld [vmem:[#allocation11] ss:$8 sm:$0x3]
    %s232 = scalar_lea.vmem [#allocation11], 1
    %v233 = vld [vmem:[%s232] ss:$8 sm:$0xf]
    %s234 = scalar_lea.vmem [#allocation11], 2
    %v235 = vld [vmem:[%s234] ss:$8 sm:$0x3]
    %s236 = scalar_lea.vmem [#allocation11], 3
    %v237 = vld [vmem:[%s236] ss:$8 sm:$0x3]
    %s238 = scalar_lea.vmem [#allocation11], 4
    %v239 = vld [vmem:[%s238] ss:$8 sm:$0x3]
    %v240 = vld [vmem:[#allocation11 + $0x5] ss:$0 sm:$0xff]
    %v241 = vld [vmem:[#allocation11 + $0x20] sm:$0xf]
    %v242 = vld [vmem:[#allocation11 + $0x28] sm:$0xf]
    %v243 = vld [vmem:[#allocation9] sm:$0xff]
    %v244 = vpack.c.bf16 %v243, %v243
    %s245 = smul.u32 4, 4
    %s246 = smul.u32 %s245, 2
    %s247 = sshll.u32 %s246, 4
    %248 = dma.done [#allocation8], %s247
    %v249 = vld [vmem:[#allocation2] sm:$0xff]
    %v250 = vld [vmem:[#allocation2 + $0x8] sm:$0xff]
    %v251 = vld [vmem:[#allocation2 + $0x10] sm:$0xff]
    %v252 = vld [vmem:[#allocation2 + $0x18] sm:$0xff]
    %v254 = vlaneseq
    %v255 = vshrl.u32 %v254, 7
    %v256 = vsub.s32 0, %v255
    %v257 = vrot.slane %v231, %v256
    %v258 = vlaneseq
    %v259 = vshrl.u32 %v258, 7
    %v260 = vsub.s32 1, %v259
    %v261 = vrot.slane %v231, %v260
    %vm264 = vcmask 261120
    %v266 = vsel %vm264, %v244, 0
    %268 = vmatprep.subr.bf16.mxu0 %v250
    %269 = vmatpush1.bf16.msra.mxu0 %v249
    %270 = vmatprep.subr.bf16.mxu0 %v252
    %271 = vmatpush1.bf16.msra.mxu0 %v251
    %272 = vmatprep.subr.bf16.mxu0 0
    %273 = vmatpush1.bf16.msra.mxu0 0
    %274 = vmatprep.subr.bf16.mxu0 0
    %275 = vmatpush1.bf16.msra.mxu0 0
    %276 = vmatprep.subr.bf16.mxu0 0
    %277 = vmatpush1.bf16.msra.mxu0 0
    %278 = vmatprep.subr.bf16.mxu0 0
    %279 = vmatpush1.bf16.msra.mxu0 0
    %280 = vmatprep.subr.bf16.mxu0 0
    %281 = vmatpush1.bf16.msra.mxu0 0
    %282 = vmatprep.subr.bf16.mxu0 0
    %283 = vmatpush1.bf16.msra.mxu0 0
    %284 = vmatprep.subr.bf16.mxu0 0
    %285 = vmatpush1.bf16.msra.mxu0 0
    %286 = vmatprep.subr.bf16.mxu0 0
    %287 = vmatpush1.bf16.msra.mxu0 0
    %288 = vmatprep.subr.bf16.mxu0 0
    %289 = vmatpush1.bf16.msra.mxu0 0
    %290 = vmatprep.subr.bf16.mxu0 0
    %291 = vmatpush1.bf16.msra.mxu0 0
    %292 = vmatprep.subr.bf16.mxu0 0
    %293 = vmatpush1.bf16.msra.mxu0 0
    %294 = vmatprep.subr.bf16.mxu0 0
    %295 = vmatpush1.bf16.msra.mxu0 0
    %296 = vmatprep.subr.bf16.mxu0 0
    %297 = vmatpush1.bf16.msra.mxu0 0
    %298 = vmatprep.subr.bf16.mxu0 0
    %299 = vmatpush1.bf16.msra.mxu0 0
    %300 = vmatprep.mubr.bf16.mxu0 0
    %301 = vmatmul.mubr.bf16.gmra.mrb[0].mxu0 %v266
    %v302 = vpop.f32.mrb[0].mxu0
    %v303 = vadd.f32 %v257, %v302
    %v304 = vpop.f32.mrb[0].mxu0
    %v305 = vadd.f32 %v261, %v304
    %v306 = vpop.f32.mrb[0].mxu0
    %v307 = vpop.f32.mrb[0].mxu0
    %308 = vdwg.mxu0
    %vm309 = vcmp.gt.f32.partialorder %v303, 0.0
    %vm310 = vcmp.gt.f32.partialorder %v305, 0.0
    %v311 = vmin.f32 %v303, 0.0
    %v312 = vmin.f32 %v305, 0.0
    %v313 = vrcp.pop 0.06
    %v314 = vmul.f32 %v311, %v313
    %v315 = vmul.f32 %v312, %v313
    %v316 = vmul.f32 %v314, 1.442695
    %v317 = vpow.pop %v316
    %v318 = vmul.f32 %v315, 1.442695
    %v319 = vpow.pop %v318
    %v320 = vsub.f32 %v317, 1.0
    %v321 = vsub.f32 %v319, 1.0
    %v322 = vmul.f32 %v320, 0.06
    %v323 = vmul.f32 %v321, 0.06
    %v324 = vsel %vm309, %v303, %v322
    %v325 = vsel %vm310, %v305, %v323
    %s326 = smul.u32 4, 32
    %s327 = smul.u32 %s326, 4
    %s328 = sshll.u32 %s327, 4
    %329 = dma.done %s79, %s328
    %v330 = vpack.c.bf16 %v324, %v324
    %v331 = vpack.c.bf16 %v325, %v325
    %v332 = vld [vmem:[#allocation3] sm:$0xff]
    %v333 = vld [vmem:[#allocation3 + $0x8] sm:$0xff]
    %v334 = vld [vmem:[#allocation3 + $0x10] sm:$0xff]
    %v335 = vld [vmem:[#allocation3 + $0x18] sm:$0xff]
    %v336 = vld [vmem:[#allocation3 + $0x20] sm:$0xff]
    %v337 = vld [vmem:[#allocation3 + $0x28] sm:$0xff]
    %v338 = vld [vmem:[#allocation3 + $0x30] sm:$0xff]
    %v339 = vld [vmem:[#allocation3 + $0x38] sm:$0xff]
    %v340 = vld [vmem:[#allocation3 + $0x40] sm:$0xff]
    %v341 = vld [vmem:[#allocation3 + $0x48] sm:$0xff]
    %v342 = vld [vmem:[#allocation3 + $0x50] sm:$0xff]
    %v343 = vld [vmem:[#allocation3 + $0x58] sm:$0xff]
    %v344 = vld [vmem:[#allocation3 + $0x60] sm:$0xff]
    %v345 = vld [vmem:[#allocation3 + $0x68] sm:$0xff]
    %v346 = vld [vmem:[#allocation3 + $0x70] sm:$0xff]
    %v347 = vld [vmem:[#allocation3 + $0x78] sm:$0xff]
    %v348 = vld [vmem:[#allocation3 + $0x80] sm:$0xff]
    %v349 = vld [vmem:[#allocation3 + $0x88] sm:$0xff]
    %v350 = vld [vmem:[#allocation3 + $0x90] sm:$0xff]
    %v351 = vld [vmem:[#allocation3 + $0x98] sm:$0xff]
    %v352 = vld [vmem:[#allocation3 + $0xa0] sm:$0xff]
    %v353 = vld [vmem:[#allocation3 + $0xa8] sm:$0xff]
    %v354 = vld [vmem:[#allocation3 + $0xb0] sm:$0xff]
    %v355 = vld [vmem:[#allocation3 + $0xb8] sm:$0xff]
    %v356 = vld [vmem:[#allocation3 + $0xc0] sm:$0xff]
    %v357 = vld [vmem:[#allocation3 + $0xc8] sm:$0xff]
    %v358 = vld [vmem:[#allocation3 + $0xd0] sm:$0xff]
    %v359 = vld [vmem:[#allocation3 + $0xd8] sm:$0xff]
    %v360 = vld [vmem:[#allocation3 + $0xe0] sm:$0xff]
    %v361 = vld [vmem:[#allocation3 + $0xe8] sm:$0xff]
    %v362 = vld [vmem:[#allocation3 + $0xf0] sm:$0xff]
    %v363 = vld [vmem:[#allocation3 + $0xf8] sm:$0xff]
    %v364 = vld [vmem:[#allocation3 + $0x100] sm:$0xff]
    %v365 = vld [vmem:[#allocation3 + $0x108] sm:$0xff]
    %v366 = vld [vmem:[#allocation3 + $0x110] sm:$0xff]
    %v367 = vld [vmem:[#allocation3 + $0x118] sm:$0xff]
    %v368 = vld [vmem:[#allocation3 + $0x120] sm:$0xff]
    %v369 = vld [vmem:[#allocation3 + $0x128] sm:$0xff]
    %v370 = vld [vmem:[#allocation3 + $0x130] sm:$0xff]
    %v371 = vld [vmem:[#allocation3 + $0x138] sm:$0xff]
    %v372 = vld [vmem:[#allocation3 + $0x140] sm:$0xff]
    %v373 = vld [vmem:[#allocation3 + $0x148] sm:$0xff]
    %v374 = vld [vmem:[#allocation3 + $0x150] sm:$0xff]
    %v375 = vld [vmem:[#allocation3 + $0x158] sm:$0xff]
    %v376 = vld [vmem:[#allocation3 + $0x160] sm:$0xff]
    %v377 = vld [vmem:[#allocation3 + $0x168] sm:$0xff]
    %v378 = vld [vmem:[#allocation3 + $0x170] sm:$0xff]
    %v379 = vld [vmem:[#allocation3 + $0x178] sm:$0xff]
    %v380 = vld [vmem:[#allocation3 + $0x180] sm:$0xff]
    %v381 = vld [vmem:[#allocation3 + $0x188] sm:$0xff]
    %v382 = vld [vmem:[#allocation3 + $0x190] sm:$0xff]
    %v383 = vld [vmem:[#allocation3 + $0x198] sm:$0xff]
    %v384 = vld [vmem:[#allocation3 + $0x1a0] sm:$0xff]
    %v385 = vld [vmem:[#allocation3 + $0x1a8] sm:$0xff]
    %v386 = vld [vmem:[#allocation3 + $0x1b0] sm:$0xff]
    %v387 = vld [vmem:[#allocation3 + $0x1b8] sm:$0xff]
    %v388 = vld [vmem:[#allocation3 + $0x1c0] sm:$0xff]
    %v389 = vld [vmem:[#allocation3 + $0x1c8] sm:$0xff]
    %v390 = vld [vmem:[#allocation3 + $0x1d0] sm:$0xff]
    %v391 = vld [vmem:[#allocation3 + $0x1d8] sm:$0xff]
    %v392 = vld [vmem:[#allocation3 + $0x1e0] sm:$0xff]
    %v393 = vld [vmem:[#allocation3 + $0x1e8] sm:$0xff]
    %v394 = vld [vmem:[#allocation3 + $0x1f0] sm:$0xff]
    %v395 = vld [vmem:[#allocation3 + $0x1f8] sm:$0xff]
    %v397 = vlaneseq
    %v398 = vshrl.u32 %v397, 7
    %v399 = vsub.s32 0, %v398
    %v400 = vrot.slane %v233, %v399
    %v401 = vlaneseq
    %v402 = vshrl.u32 %v401, 7
    %v403 = vsub.s32 1, %v402
    %v404 = vrot.slane %v233, %v403
    %v405 = vlaneseq
    %v406 = vshrl.u32 %v405, 7
    %v407 = vsub.s32 2, %v406
    %v408 = vrot.slane %v233, %v407
    %v409 = vlaneseq
    %v410 = vshrl.u32 %v409, 7
    %v411 = vsub.s32 3, %v410
    %v412 = vrot.slane %v233, %v411
    %417 = vmatprep.subr.bf16.mxu0 %v333
    %418 = vmatpush1.bf16.msra.mxu0 %v332
    %419 = vmatprep.subr.bf16.mxu0 %v337
    %420 = vmatpush1.bf16.msra.mxu0 %v336
    %421 = vmatprep.subr.bf16.mxu0 %v341
    %422 = vmatpush1.bf16.msra.mxu0 %v340
    %423 = vmatprep.subr.bf16.mxu0 %v345
    %424 = vmatpush1.bf16.msra.mxu0 %v344
    %425 = vmatprep.subr.bf16.mxu0 %v349
    %426 = vmatpush1.bf16.msra.mxu0 %v348
    %427 = vmatprep.subr.bf16.mxu0 %v353
    %428 = vmatpush1.bf16.msra.mxu0 %v352
    %429 = vmatprep.subr.bf16.mxu0 %v357
    %430 = vmatpush1.bf16.msra.mxu0 %v356
    %431 = vmatprep.subr.bf16.mxu0 %v361
    %432 = vmatpush1.bf16.msra.mxu0 %v360
    %433 = vmatprep.subr.bf16.mxu0 %v365
    %434 = vmatpush1.bf16.msra.mxu0 %v364
    %435 = vmatprep.subr.bf16.mxu0 %v369
    %436 = vmatpush1.bf16.msra.mxu0 %v368
    %437 = vmatprep.subr.bf16.mxu0 %v373
    %438 = vmatpush1.bf16.msra.mxu0 %v372
    %439 = vmatprep.subr.bf16.mxu0 %v377
    %440 = vmatpush1.bf16.msra.mxu0 %v376
    %441 = vmatprep.subr.bf16.mxu0 %v381
    %442 = vmatpush1.bf16.msra.mxu0 %v380
    %443 = vmatprep.subr.bf16.mxu0 %v385
    %444 = vmatpush1.bf16.msra.mxu0 %v384
    %445 = vmatprep.subr.bf16.mxu0 %v389
    %446 = vmatpush1.bf16.msra.mxu0 %v388
    %447 = vmatprep.subr.bf16.mxu0 %v393
    %448 = vmatpush1.bf16.msra.mxu0 %v392
    %449 = vmatprep.mubr.bf16.mxu0 %v331
    %450 = vmatmul.mubr.bf16.gmra.mrb[0].mxu0 %v330
    %v451 = vpop.f32.mrb[0].mxu0
    %v452 = vadd.f32 %v400, %v451
    %v453 = vpop.f32.mrb[0].mxu0
    %v454 = vadd.f32 %v404, %v453
    %v455 = vpop.f32.mrb[0].mxu0
    %v456 = vpop.f32.mrb[0].mxu0
    %457 = vdwg.mxu0
    %458 = vmatprep.subr.bf16.mxu0 %v335
    %459 = vmatpush1.bf16.msra.mxu0 %v334
    %460 = vmatprep.subr.bf16.mxu0 %v339
    %461 = vmatpush1.bf16.msra.mxu0 %v338
    %462 = vmatprep.subr.bf16.mxu0 %v343
    %463 = vmatpush1.bf16.msra.mxu0 %v342
    %464 = vmatprep.subr.bf16.mxu0 %v347
    %465 = vmatpush1.bf16.msra.mxu0 %v346
    %466 = vmatprep.subr.bf16.mxu0 %v351
    %467 = vmatpush1.bf16.msra.mxu0 %v350
    %468 = vmatprep.subr.bf16.mxu0 %v355
    %469 = vmatpush1.bf16.msra.mxu0 %v354
    %470 = vmatprep.subr.bf16.mxu0 %v359
    %471 = vmatpush1.bf16.msra.mxu0 %v358
    %472 = vmatprep.subr.bf16.mxu0 %v363
    %473 = vmatpush1.bf16.msra.mxu0 %v362
    %474 = vmatprep.subr.bf16.mxu0 %v367
    %475 = vmatpush1.bf16.msra.mxu0 %v366
    %476 = vmatprep.subr.bf16.mxu0 %v371
    %477 = vmatpush1.bf16.msra.mxu0 %v370
    %478 = vmatprep.subr.bf16.mxu0 %v375
    %479 = vmatpush1.bf16.msra.mxu0 %v374
    %480 = vmatprep.subr.bf16.mxu0 %v379
    %481 = vmatpush1.bf16.msra.mxu0 %v378
    %482 = vmatprep.subr.bf16.mxu0 %v383
    %483 = vmatpush1.bf16.msra.mxu0 %v382
    %484 = vmatprep.subr.bf16.mxu0 %v387
    %485 = vmatpush1.bf16.msra.mxu0 %v386
    %486 = vmatprep.subr.bf16.mxu0 %v391
    %487 = vmatpush1.bf16.msra.mxu0 %v390
    %488 = vmatprep.subr.bf16.mxu0 %v395
    %489 = vmatpush1.bf16.msra.mxu0 %v394
    %490 = vmatprep.mubr.bf16.mxu0 %v331
    %491 = vmatmul.mubr.bf16.gmra.mrb[0].mxu0 %v330
    %v492 = vpop.f32.mrb[0].mxu0
    %v493 = vadd.f32 %v408, %v492
    %v494 = vpop.f32.mrb[0].mxu0
    %v495 = vadd.f32 %v412, %v494
    %v496 = vpop.f32.mrb[0].mxu0
    %v497 = vpop.f32.mrb[0].mxu0
    %498 = vdwg.mxu0
    %v499 = vmax.f32 %v452, 0.0
    %v500 = vmax.f32 %v454, 0.0
    %v501 = vmax.f32 %v493, 0.0
    %v502 = vmax.f32 %v495, 0.0
    %s503 = smul.u32 4, 64
    %s504 = smul.u32 %s503, 2
    %s505 = sshll.u32 %s504, 4
    %506 = dma.done %s114, %s505
    %v507 = vpack.c.bf16 %v499, %v499
    %v508 = vpack.c.bf16 %v500, %v500
    %v509 = vpack.c.bf16 %v501, %v501
    %v510 = vpack.c.bf16 %v502, %v502
    %v511 = vld [vmem:[#allocation4] sm:$0xff]
    %v512 = vld [vmem:[#allocation4 + $0x8] sm:$0xff]
    %v513 = vld [vmem:[#allocation4 + $0x10] sm:$0xff]
    %v514 = vld [vmem:[#allocation4 + $0x18] sm:$0xff]
    %v515 = vld [vmem:[#allocation4 + $0x20] sm:$0xff]
    %v516 = vld [vmem:[#allocation4 + $0x28] sm:$0xff]
    %v517 = vld [vmem:[#allocation4 + $0x30] sm:$0xff]
    %v518 = vld [vmem:[#allocation4 + $0x38] sm:$0xff]
    %v519 = vld [vmem:[#allocation4 + $0x40] sm:$0xff]
    %v520 = vld [vmem:[#allocation4 + $0x48] sm:$0xff]
    %v521 = vld [vmem:[#allocation4 + $0x50] sm:$0xff]
    %v522 = vld [vmem:[#allocation4 + $0x58] sm:$0xff]
    %v523 = vld [vmem:[#allocation4 + $0x60] sm:$0xff]
    %v524 = vld [vmem:[#allocation4 + $0x68] sm:$0xff]
    %v525 = vld [vmem:[#allocation4 + $0x70] sm:$0xff]
    %v526 = vld [vmem:[#allocation4 + $0x78] sm:$0xff]
    %v527 = vld [vmem:[#allocation4 + $0x80] sm:$0xff]
    %v528 = vld [vmem:[#allocation4 + $0x88] sm:$0xff]
    %v529 = vld [vmem:[#allocation4 + $0x90] sm:$0xff]
    %v530 = vld [vmem:[#allocation4 + $0x98] sm:$0xff]
    %v531 = vld [vmem:[#allocation4 + $0xa0] sm:$0xff]
    %v532 = vld [vmem:[#allocation4 + $0xa8] sm:$0xff]
    %v533 = vld [vmem:[#allocation4 + $0xb0] sm:$0xff]
    %v534 = vld [vmem:[#allocation4 + $0xb8] sm:$0xff]
    %v535 = vld [vmem:[#allocation4 + $0xc0] sm:$0xff]
    %v536 = vld [vmem:[#allocation4 + $0xc8] sm:$0xff]
    %v537 = vld [vmem:[#allocation4 + $0xd0] sm:$0xff]
    %v538 = vld [vmem:[#allocation4 + $0xd8] sm:$0xff]
    %v539 = vld [vmem:[#allocation4 + $0xe0] sm:$0xff]
    %v540 = vld [vmem:[#allocation4 + $0xe8] sm:$0xff]
    %v541 = vld [vmem:[#allocation4 + $0xf0] sm:$0xff]
    %v542 = vld [vmem:[#allocation4 + $0xf8] sm:$0xff]
    %v543 = vld [vmem:[#allocation4 + $0x100] sm:$0xff]
    %v544 = vld [vmem:[#allocation4 + $0x108] sm:$0xff]
    %v545 = vld [vmem:[#allocation4 + $0x110] sm:$0xff]
    %v546 = vld [vmem:[#allocation4 + $0x118] sm:$0xff]
    %v547 = vld [vmem:[#allocation4 + $0x120] sm:$0xff]
    %v548 = vld [vmem:[#allocation4 + $0x128] sm:$0xff]
    %v549 = vld [vmem:[#allocation4 + $0x130] sm:$0xff]
    %v550 = vld [vmem:[#allocation4 + $0x138] sm:$0xff]
    %v551 = vld [vmem:[#allocation4 + $0x140] sm:$0xff]
    %v552 = vld [vmem:[#allocation4 + $0x148] sm:$0xff]
    %v553 = vld [vmem:[#allocation4 + $0x150] sm:$0xff]
    %v554 = vld [vmem:[#allocation4 + $0x158] sm:$0xff]
    %v555 = vld [vmem:[#allocation4 + $0x160] sm:$0xff]
    %v556 = vld [vmem:[#allocation4 + $0x168] sm:$0xff]
    %v557 = vld [vmem:[#allocation4 + $0x170] sm:$0xff]
    %v558 = vld [vmem:[#allocation4 + $0x178] sm:$0xff]
    %v559 = vld [vmem:[#allocation4 + $0x180] sm:$0xff]
    %v560 = vld [vmem:[#allocation4 + $0x188] sm:$0xff]
    %v561 = vld [vmem:[#allocation4 + $0x190] sm:$0xff]
    %v562 = vld [vmem:[#allocation4 + $0x198] sm:$0xff]
    %v563 = vld [vmem:[#allocation4 + $0x1a0] sm:$0xff]
    %v564 = vld [vmem:[#allocation4 + $0x1a8] sm:$0xff]
    %v565 = vld [vmem:[#allocation4 + $0x1b0] sm:$0xff]
    %v566 = vld [vmem:[#allocation4 + $0x1b8] sm:$0xff]
    %v567 = vld [vmem:[#allocation4 + $0x1c0] sm:$0xff]
    %v568 = vld [vmem:[#allocation4 + $0x1c8] sm:$0xff]
    %v569 = vld [vmem:[#allocation4 + $0x1d0] sm:$0xff]
    %v570 = vld [vmem:[#allocation4 + $0x1d8] sm:$0xff]
    %v571 = vld [vmem:[#allocation4 + $0x1e0] sm:$0xff]
    %v572 = vld [vmem:[#allocation4 + $0x1e8] sm:$0xff]
    %v573 = vld [vmem:[#allocation4 + $0x1f0] sm:$0xff]
    %v574 = vld [vmem:[#allocation4 + $0x1f8] sm:$0xff]
    %v576 = vlaneseq
    %v577 = vshrl.u32 %v576, 7
    %v578 = vsub.s32 0, %v577
    %v579 = vrot.slane %v235, %v578
    %v580 = vlaneseq
    %v581 = vshrl.u32 %v580, 7
    %v582 = vsub.s32 1, %v581
    %v583 = vrot.slane %v235, %v582
    %586 = vmatprep.subr.bf16.mxu0 %v512
    %587 = vmatpush1.bf16.msra.mxu0 %v511
    %588 = vmatprep.subr.bf16.mxu0 %v514
    %589 = vmatpush1.bf16.msra.mxu0 %v513
    %590 = vmatprep.subr.bf16.mxu0 %v516
    %591 = vmatpush1.bf16.msra.mxu0 %v515
    %592 = vmatprep.subr.bf16.mxu0 %v518
    %593 = vmatpush1.bf16.msra.mxu0 %v517
    %594 = vmatprep.subr.bf16.mxu0 %v520
    %595 = vmatpush1.bf16.msra.mxu0 %v519
    %596 = vmatprep.subr.bf16.mxu0 %v522
    %597 = vmatpush1.bf16.msra.mxu0 %v521
    %598 = vmatprep.subr.bf16.mxu0 %v524
    %599 = vmatpush1.bf16.msra.mxu0 %v523
    %600 = vmatprep.subr.bf16.mxu0 %v526
    %601 = vmatpush1.bf16.msra.mxu0 %v525
    %602 = vmatprep.subr.bf16.mxu0 %v528
    %603 = vmatpush1.bf16.msra.mxu0 %v527
    %604 = vmatprep.subr.bf16.mxu0 %v530
    %605 = vmatpush1.bf16.msra.mxu0 %v529
    %606 = vmatprep.subr.bf16.mxu0 %v532
    %607 = vmatpush1.bf16.msra.mxu0 %v531
    %608 = vmatprep.subr.bf16.mxu0 %v534
    %609 = vmatpush1.bf16.msra.mxu0 %v533
    %610 = vmatprep.subr.bf16.mxu0 %v536
    %611 = vmatpush1.bf16.msra.mxu0 %v535
    %612 = vmatprep.subr.bf16.mxu0 %v538
    %613 = vmatpush1.bf16.msra.mxu0 %v537
    %614 = vmatprep.subr.bf16.mxu0 %v540
    %615 = vmatpush1.bf16.msra.mxu0 %v539
    %616 = vmatprep.subr.bf16.mxu0 %v542
    %617 = vmatpush1.bf16.msra.mxu0 %v541
    %618 = vmatprep.mubr.bf16.mxu0 %v508
    %619 = vmatmul.mubr.bf16.gmra.mrb[0].mxu0 %v507
    %v620 = vpop.f32.mrb[0].mxu0
    %v621 = vadd.f32 %v579, %v620
    %v622 = vpop.f32.mrb[0].mxu0
    %v623 = vadd.f32 %v583, %v622
    %v624 = vpop.f32.mrb[0].mxu0
    %v625 = vpop.f32.mrb[0].mxu0
    %626 = vdwg.mxu0
    %627 = vmatprep.subr.bf16.mxu0 %v544
    %628 = vmatpush1.bf16.msra.mxu0 %v543
    %629 = vmatprep.subr.bf16.mxu0 %v546
    %630 = vmatpush1.bf16.msra.mxu0 %v545
    %631 = vmatprep.subr.bf16.mxu0 %v548
    %632 = vmatpush1.bf16.msra.mxu0 %v547
    %633 = vmatprep.subr.bf16.mxu0 %v550
    %634 = vmatpush1.bf16.msra.mxu0 %v549
    %635 = vmatprep.subr.bf16.mxu0 %v552
    %636 = vmatpush1.bf16.msra.mxu0 %v551
    %637 = vmatprep.subr.bf16.mxu0 %v554
    %638 = vmatpush1.bf16.msra.mxu0 %v553
    %639 = vmatprep.subr.bf16.mxu0 %v556
    %640 = vmatpush1.bf16.msra.mxu0 %v555
    %641 = vmatprep.subr.bf16.mxu0 %v558
    %642 = vmatpush1.bf16.msra.mxu0 %v557
    %643 = vmatprep.subr.bf16.mxu0 %v560
    %644 = vmatpush1.bf16.msra.mxu0 %v559
    %645 = vmatprep.subr.bf16.mxu0 %v562
    %646 = vmatpush1.bf16.msra.mxu0 %v561
    %647 = vmatprep.subr.bf16.mxu0 %v564
    %648 = vmatpush1.bf16.msra.mxu0 %v563
    %649 = vmatprep.subr.bf16.mxu0 %v566
    %650 = vmatpush1.bf16.msra.mxu0 %v565
    %651 = vmatprep.subr.bf16.mxu0 %v568
    %652 = vmatpush1.bf16.msra.mxu0 %v567
    %653 = vmatprep.subr.bf16.mxu0 %v570
    %654 = vmatpush1.bf16.msra.mxu0 %v569
    %655 = vmatprep.subr.bf16.mxu0 %v572
    %656 = vmatpush1.bf16.msra.mxu0 %v571
    %657 = vmatprep.subr.bf16.mxu0 %v574
    %658 = vmatpush1.bf16.msra.mxu0 %v573
    %659 = vmatprep.mubr.bf16.mxu0 %v510
    %660 = vmatmul.mubr.bf16.gmra.mrb[0].mxu0 %v509
    %v661 = vpop.f32.mrb[0].mxu0
    %v662 = vadd.f32 %v621, %v661
    %v663 = vpop.f32.mrb[0].mxu0
    %v664 = vadd.f32 %v623, %v663
    %v665 = vpop.f32.mrb[0].mxu0
    %v666 = vpop.f32.mrb[0].mxu0
    %667 = vdwg.mxu0
    %v668 = vmax.f32 %v662, 0.0
    %v669 = vmax.f32 %v664, 0.0
    %s670 = smul.u32 %s326, 2
    %s671 = sshll.u32 %s670, 4
    %672 = dma.done %s149, %s671
    %v673 = vpack.c.bf16 %v668, %v668
    %v674 = vpack.c.bf16 %v669, %v669
    %v675 = vld [vmem:[#allocation5] sm:$0xff]
    %v676 = vld [vmem:[#allocation5 + $0x8] sm:$0xff]
    %v677 = vld [vmem:[#allocation5 + $0x10] sm:$0xff]
    %v678 = vld [vmem:[#allocation5 + $0x18] sm:$0xff]
    %v679 = vld [vmem:[#allocation5 + $0x20] sm:$0xff]
    %v680 = vld [vmem:[#allocation5 + $0x28] sm:$0xff]
    %v681 = vld [vmem:[#allocation5 + $0x30] sm:$0xff]
    %v682 = vld [vmem:[#allocation5 + $0x38] sm:$0xff]
    %v683 = vld [vmem:[#allocation5 + $0x40] sm:$0xff]
    %v684 = vld [vmem:[#allocation5 + $0x48] sm:$0xff]
    %v685 = vld [vmem:[#allocation5 + $0x50] sm:$0xff]
    %v686 = vld [vmem:[#allocation5 + $0x58] sm:$0xff]
    %v687 = vld [vmem:[#allocation5 + $0x60] sm:$0xff]
    %v688 = vld [vmem:[#allocation5 + $0x68] sm:$0xff]
    %v689 = vld [vmem:[#allocation5 + $0x70] sm:$0xff]
    %v690 = vld [vmem:[#allocation5 + $0x78] sm:$0xff]
    %v691 = vld [vmem:[#allocation5 + $0x80] sm:$0xff]
    %v692 = vld [vmem:[#allocation5 + $0x88] sm:$0xff]
    %v693 = vld [vmem:[#allocation5 + $0x90] sm:$0xff]
    %v694 = vld [vmem:[#allocation5 + $0x98] sm:$0xff]
    %v695 = vld [vmem:[#allocation5 + $0xa0] sm:$0xff]
    %v696 = vld [vmem:[#allocation5 + $0xa8] sm:$0xff]
    %v697 = vld [vmem:[#allocation5 + $0xb0] sm:$0xff]
    %v698 = vld [vmem:[#allocation5 + $0xb8] sm:$0xff]
    %v699 = vld [vmem:[#allocation5 + $0xc0] sm:$0xff]
    %v700 = vld [vmem:[#allocation5 + $0xc8] sm:$0xff]
    %v701 = vld [vmem:[#allocation5 + $0xd0] sm:$0xff]
    %v702 = vld [vmem:[#allocation5 + $0xd8] sm:$0xff]
    %v703 = vld [vmem:[#allocation5 + $0xe0] sm:$0xff]
    %v704 = vld [vmem:[#allocation5 + $0xe8] sm:$0xff]
    %v705 = vld [vmem:[#allocation5 + $0xf0] sm:$0xff]
    %v706 = vld [vmem:[#allocation5 + $0xf8] sm:$0xff]
    %v708 = vlaneseq
    %v709 = vshrl.u32 %v708, 7
    %v710 = vsub.s32 0, %v709
    %v711 = vrot.slane %v237, %v710
    %v712 = vlaneseq
    %v713 = vshrl.u32 %v712, 7
    %v714 = vsub.s32 1, %v713
    %v715 = vrot.slane %v237, %v714
    %718 = vmatprep.subr.bf16.mxu0 %v676
    %719 = vmatpush1.bf16.msra.mxu0 %v675
    %720 = vmatprep.subr.bf16.mxu0 %v678
    %721 = vmatpush1.bf16.msra.mxu0 %v677
    %722 = vmatprep.subr.bf16.mxu0 %v680
    %723 = vmatpush1.bf16.msra.mxu0 %v679
    %724 = vmatprep.subr.bf16.mxu0 %v682
    %725 = vmatpush1.bf16.msra.mxu0 %v681
    %726 = vmatprep.subr.bf16.mxu0 %v684
    %727 = vmatpush1.bf16.msra.mxu0 %v683
    %728 = vmatprep.subr.bf16.mxu0 %v686
    %729 = vmatpush1.bf16.msra.mxu0 %v685
    %730 = vmatprep.subr.bf16.mxu0 %v688
    %731 = vmatpush1.bf16.msra.mxu0 %v687
    %732 = vmatprep.subr.bf16.mxu0 %v690
    %733 = vmatpush1.bf16.msra.mxu0 %v689
    %734 = vmatprep.subr.bf16.mxu0 %v692
    %735 = vmatpush1.bf16.msra.mxu0 %v691
    %736 = vmatprep.subr.bf16.mxu0 %v694
    %737 = vmatpush1.bf16.msra.mxu0 %v693
    %738 = vmatprep.subr.bf16.mxu0 %v696
    %739 = vmatpush1.bf16.msra.mxu0 %v695
    %740 = vmatprep.subr.bf16.mxu0 %v698
    %741 = vmatpush1.bf16.msra.mxu0 %v697
    %742 = vmatprep.subr.bf16.mxu0 %v700
    %743 = vmatpush1.bf16.msra.mxu0 %v699
    %744 = vmatprep.subr.bf16.mxu0 %v702
    %745 = vmatpush1.bf16.msra.mxu0 %v701
    %746 = vmatprep.subr.bf16.mxu0 %v704
    %747 = vmatpush1.bf16.msra.mxu0 %v703
    %748 = vmatprep.subr.bf16.mxu0 %v706
    %749 = vmatpush1.bf16.msra.mxu0 %v705
    %750 = vmatprep.mubr.bf16.mxu0 %v674
    %751 = vmatmul.mubr.bf16.gmra.mrb[0].mxu0 %v673
    %v752 = vpop.f32.mrb[0].mxu0
    %v753 = vadd.f32 %v711, %v752
    %v754 = vpop.f32.mrb[0].mxu0
    %v755 = vadd.f32 %v715, %v754
    %v756 = vpop.f32.mrb[0].mxu0
    %v757 = vpop.f32.mrb[0].mxu0
    %758 = vdwg.mxu0
    %v759 = vmax.f32 %v753, 0.0
    %v760 = vmax.f32 %v755, 0.0
    %s761 = sshll.u32 %s670, 4
    %762 = dma.done %s184, %s761
    %v763 = vpack.c.bf16 %v759, %v759
    %v764 = vpack.c.bf16 %v760, %v760
    %v765 = vld [vmem:[#allocation6] sm:$0xff]
    %v766 = vld [vmem:[#allocation6 + $0x8] sm:$0xff]
    %v767 = vld [vmem:[#allocation6 + $0x10] sm:$0xff]
    %v768 = vld [vmem:[#allocation6 + $0x18] sm:$0xff]
    %v769 = vld [vmem:[#allocation6 + $0x20] sm:$0xff]
    %v770 = vld [vmem:[#allocation6 + $0x28] sm:$0xff]
    %v771 = vld [vmem:[#allocation6 + $0x30] sm:$0xff]
    %v772 = vld [vmem:[#allocation6 + $0x38] sm:$0xff]
    %v773 = vld [vmem:[#allocation6 + $0x40] sm:$0xff]
    %v774 = vld [vmem:[#allocation6 + $0x48] sm:$0xff]
    %v775 = vld [vmem:[#allocation6 + $0x50] sm:$0xff]
    %v776 = vld [vmem:[#allocation6 + $0x58] sm:$0xff]
    %v777 = vld [vmem:[#allocation6 + $0x60] sm:$0xff]
    %v778 = vld [vmem:[#allocation6 + $0x68] sm:$0xff]
    %v779 = vld [vmem:[#allocation6 + $0x70] sm:$0xff]
    %v780 = vld [vmem:[#allocation6 + $0x78] sm:$0xff]
    %v781 = vld [vmem:[#allocation6 + $0x80] sm:$0xff]
    %v782 = vld [vmem:[#allocation6 + $0x88] sm:$0xff]
    %v783 = vld [vmem:[#allocation6 + $0x90] sm:$0xff]
    %v784 = vld [vmem:[#allocation6 + $0x98] sm:$0xff]
    %v785 = vld [vmem:[#allocation6 + $0xa0] sm:$0xff]
    %v786 = vld [vmem:[#allocation6 + $0xa8] sm:$0xff]
    %v787 = vld [vmem:[#allocation6 + $0xb0] sm:$0xff]
    %v788 = vld [vmem:[#allocation6 + $0xb8] sm:$0xff]
    %v789 = vld [vmem:[#allocation6 + $0xc0] sm:$0xff]
    %v790 = vld [vmem:[#allocation6 + $0xc8] sm:$0xff]
    %v791 = vld [vmem:[#allocation6 + $0xd0] sm:$0xff]
    %v792 = vld [vmem:[#allocation6 + $0xd8] sm:$0xff]
    %v793 = vld [vmem:[#allocation6 + $0xe0] sm:$0xff]
    %v794 = vld [vmem:[#allocation6 + $0xe8] sm:$0xff]
    %v795 = vld [vmem:[#allocation6 + $0xf0] sm:$0xff]
    %v796 = vld [vmem:[#allocation6 + $0xf8] sm:$0xff]
    %v798 = vlaneseq
    %v799 = vshrl.u32 %v798, 7
    %v800 = vsub.s32 0, %v799
    %v801 = vrot.slane %v239, %v800
    %v802 = vlaneseq
    %v803 = vshrl.u32 %v802, 7
    %v804 = vsub.s32 1, %v803
    %v805 = vrot.slane %v239, %v804
    %808 = vmatprep.subr.bf16.mxu0 %v766
    %809 = vmatpush1.bf16.msra.mxu0 %v765
    %810 = vmatprep.subr.bf16.mxu0 %v768
    %811 = vmatpush1.bf16.msra.mxu0 %v767
    %812 = vmatprep.subr.bf16.mxu0 %v770
    %813 = vmatpush1.bf16.msra.mxu0 %v769
    %814 = vmatprep.subr.bf16.mxu0 %v772
    %815 = vmatpush1.bf16.msra.mxu0 %v771
    %816 = vmatprep.subr.bf16.mxu0 %v774
    %817 = vmatpush1.bf16.msra.mxu0 %v773
    %818 = vmatprep.subr.bf16.mxu0 %v776
    %819 = vmatpush1.bf16.msra.mxu0 %v775
    %820 = vmatprep.subr.bf16.mxu0 %v778
    %821 = vmatpush1.bf16.msra.mxu0 %v777
    %822 = vmatprep.subr.bf16.mxu0 %v780
    %823 = vmatpush1.bf16.msra.mxu0 %v779
    %824 = vmatprep.subr.bf16.mxu0 %v782
    %825 = vmatpush1.bf16.msra.mxu0 %v781
    %826 = vmatprep.subr.bf16.mxu0 %v784
    %827 = vmatpush1.bf16.msra.mxu0 %v783
    %828 = vmatprep.subr.bf16.mxu0 %v786
    %829 = vmatpush1.bf16.msra.mxu0 %v785
    %830 = vmatprep.subr.bf16.mxu0 %v788
    %831 = vmatpush1.bf16.msra.mxu0 %v787
    %832 = vmatprep.subr.bf16.mxu0 %v790
    %833 = vmatpush1.bf16.msra.mxu0 %v789
    %834 = vmatprep.subr.bf16.mxu0 %v792
    %835 = vmatpush1.bf16.msra.mxu0 %v791
    %836 = vmatprep.subr.bf16.mxu0 %v794
    %837 = vmatpush1.bf16.msra.mxu0 %v793
    %838 = vmatprep.subr.bf16.mxu0 %v796
    %839 = vmatpush1.bf16.msra.mxu0 %v795
    %840 = vmatprep.mubr.bf16.mxu0 %v764
    %841 = vmatmul.mubr.bf16.gmra.mrb[0].mxu0 %v763
    %v842 = vpop.f32.mrb[0].mxu0
    %v843 = vadd.f32 %v801, %v842
    %v844 = vpop.f32.mrb[0].mxu0
    %v845 = vadd.f32 %v805, %v844
    %v846 = vpop.f32.mrb[0].mxu0
    %v847 = vpop.f32.mrb[0].mxu0
    %848 = vdwg.mxu0
    %v849 = vmax.f32 %v843, 0.0
    %v850 = vmax.f32 %v845, 0.0
    %v851 = vmul.f32 %v849, %v668
    %v852 = vmul.f32 %v850, %v669
    %853 = vrot.lane.b32.xlu0 %v851, 1
    %v854 = vpop.permute.xlu0 %853
    %855 = vrot.lane.b32.xlu0 %v852, 1
    %v856 = vpop.permute.xlu0 %855
    %v857 = vlaneseq
    %v858 = vand.u32 %v857, 127
    %vm859 = vcmp.lt.s32.totalorder %v858, 1
    %v860 = vsel %vm859, %v854, %v856
    %v861 = vsel %vm859, %v856, %v854
    %v862 = vlaneseq
    %v863 = vshrl.u32 %v862, 7
    %v864 = vsub.s32 0, %v863
    %v865 = vrot.slane %v241, %v864
    %v866 = vlaneseq
    %v867 = vshrl.u32 %v866, 7
    %v868 = vsub.s32 0, %v867
    %v869 = vrot.slane %v242, %v868
    %v870 = vadd.f32 %v861, %v865
    %v871 = vadd.f32 %v860, %v869
    %v872 = vmax.f32 %v851, %v870
    %v873 = vmax.f32 %v852, %v871
    %874 = vrot.lane.b32.xlu0 %v851, 127
    %v875 = vpop.permute.xlu0 %874
    %876 = vrot.lane.b32.xlu0 %v852, 127
    %v877 = vpop.permute.xlu0 %876
    %vm878 = vcmp.lt.s32.totalorder %v858, 127
    %v879 = vsel %vm878, %v875, %v877
    %v880 = vsel %vm878, %v877, %v875
    %v881 = vlaneseq
    %v882 = vshrl.u32 %v881, 7
    %v883 = vsub.s32 2, %v882
    %v884 = vrot.slane %v241, %v883
    %v885 = vlaneseq
    %v886 = vshrl.u32 %v885, 7
    %v887 = vsub.s32 2, %v886
    %v888 = vrot.slane %v242, %v887
    %v889 = vadd.f32 %v879, %v884
    %v890 = vadd.f32 %v880, %v888
    %v891 = vmax.f32 %v872, %v889
    %v892 = vmax.f32 %v873, %v890
    %893 = vrot.lane.b32.xlu0 %v851, 126
    %v894 = vpop.permute.xlu0 %893
    %895 = vrot.lane.b32.xlu0 %v852, 126
    %v896 = vpop.permute.xlu0 %895
    %vm897 = vcmp.lt.s32.totalorder %v858, 126
    %v898 = vsel %vm897, %v894, %v896
    %v899 = vsel %vm897, %v896, %v894
    %v900 = vlaneseq
    %v901 = vshrl.u32 %v900, 7
    %v902 = vsub.s32 3, %v901
    %v903 = vrot.slane %v241, %v902
    %v904 = vlaneseq
    %v905 = vshrl.u32 %v904, 7
    %v906 = vsub.s32 3, %v905
    %v907 = vrot.slane %v242, %v906
    %v908 = vadd.f32 %v898, %v903
    %v909 = vadd.f32 %v899, %v907
    %v910 = vmax.f32 %v891, %v908
    %v911 = vmax.f32 %v892, %v909
    %s912 = smul.u32 %s326, 1
    %s913 = sshll.u32 %s912, 4
    %914 = dma.done %s219, %s913
    %v915 = vpack.c.bf16 %v910, %v910
    %v916 = vpack.c.bf16 %v911, %v911
    %v917 = vld [vmem:[#allocation7] sm:$0xff]
    %v918 = vld [vmem:[#allocation7 + $0x8] sm:$0xff]
    %v919 = vld [vmem:[#allocation7 + $0x10] sm:$0xff]
    %v920 = vld [vmem:[#allocation7 + $0x18] sm:$0xff]
    %v921 = vld [vmem:[#allocation7 + $0x20] sm:$0xff]
    %v922 = vld [vmem:[#allocation7 + $0x28] sm:$0xff]
    %v923 = vld [vmem:[#allocation7 + $0x30] sm:$0xff]
    %v924 = vld [vmem:[#allocation7 + $0x38] sm:$0xff]
    %v925 = vld [vmem:[#allocation7 + $0x40] sm:$0xff]
    %v926 = vld [vmem:[#allocation7 + $0x48] sm:$0xff]
    %v927 = vld [vmem:[#allocation7 + $0x50] sm:$0xff]
    %v928 = vld [vmem:[#allocation7 + $0x58] sm:$0xff]
    %v929 = vld [vmem:[#allocation7 + $0x60] sm:$0xff]
    %v930 = vld [vmem:[#allocation7 + $0x68] sm:$0xff]
    %v931 = vld [vmem:[#allocation7 + $0x70] sm:$0xff]
    %v932 = vld [vmem:[#allocation7 + $0x78] sm:$0xff]
    %933 = vmatprep.subr.bf16.mxu0 0
    %934 = vmatpush1.bf16.msra.mxu0 %v917
    %935 = vmatprep.subr.bf16.mxu0 0
    %936 = vmatpush1.bf16.msra.mxu0 %v918
    %937 = vmatprep.subr.bf16.mxu0 0
    %938 = vmatpush1.bf16.msra.mxu0 %v919
    %939 = vmatprep.subr.bf16.mxu0 0
    %940 = vmatpush1.bf16.msra.mxu0 %v920
    %941 = vmatprep.subr.bf16.mxu0 0
    %942 = vmatpush1.bf16.msra.mxu0 %v921
    %943 = vmatprep.subr.bf16.mxu0 0
    %944 = vmatpush1.bf16.msra.mxu0 %v922
    %945 = vmatprep.subr.bf16.mxu0 0
    %946 = vmatpush1.bf16.msra.mxu0 %v923
    %947 = vmatprep.subr.bf16.mxu0 0
    %948 = vmatpush1.bf16.msra.mxu0 %v924
    %949 = vmatprep.subr.bf16.mxu0 0
    %950 = vmatpush1.bf16.msra.mxu0 %v925
    %951 = vmatprep.subr.bf16.mxu0 0
    %952 = vmatpush1.bf16.msra.mxu0 %v926
    %953 = vmatprep.subr.bf16.mxu0 0
    %954 = vmatpush1.bf16.msra.mxu0 %v927
    %955 = vmatprep.subr.bf16.mxu0 0
    %956 = vmatpush1.bf16.msra.mxu0 %v928
    %957 = vmatprep.subr.bf16.mxu0 0
    %958 = vmatpush1.bf16.msra.mxu0 %v929
    %959 = vmatprep.subr.bf16.mxu0 0
    %960 = vmatpush1.bf16.msra.mxu0 %v930
    %961 = vmatprep.subr.bf16.mxu0 0
    %962 = vmatpush1.bf16.msra.mxu0 %v931
    %963 = vmatprep.subr.bf16.mxu0 0
    %964 = vmatpush1.bf16.msra.mxu0 %v932
    %965 = vmatprep.mubr.bf16.mxu0 %v916
    %966 = vmatmul.mubr.bf16.gmra.mrb[0].mxu0 %v915
    %v967 = vpop.f32.mrb[0].mxu0
    %v968 = vadd.f32 %v240, %v967
    %v969 = vpop.f32.mrb[0].mxu0
    %v970 = vpop.f32.mrb[0].mxu0
    %v971 = vpop.f32.mrb[0].mxu0
    %972 = vdwg.mxu0
    %973 = vst [vmem:[%s8] sm:$0xff] %v968
    // Predicated region
    $region22: #{cnn_forward.1} parent=1 // pred_check
      _
    $region23: #{cnn_forward.1} parent=1 // pred_check_branch
      %975 = sbr.rel (0) target = $region25
    $region24: #{cnn_forward.1} parent=1 // pred_region
      _
    $region25: #{cnn_forward.1} parent=1 // pred_fallthru
      _
    // Predicated region
    $region26: #{cnn_forward.1} parent=1 // pred_check
      _
    $region27: #{cnn_forward.1} parent=1 // pred_check_branch
      %977 = sbr.rel (0) target = $region29
    $region28: #{cnn_forward.1} parent=1 // pred_region
      _
    $region29: #{cnn_forward.1} parent=1 // pred_fallthru
      _
    %978 = vsyncpa [#allocation10], 1
    %979 = vsyncpa [#allocation12], 1
  %980 = vsyncmov [#allocation8]
  %s981 = vpop.sfrf %980
  %p982 = scmp.eq.s32.totalorder %s981, 0
  %p983 = pneg %p982
  %985 = shalt.err (%p983)
  %s986 = scalar_lea.sflag [#allocation8], 1
  %987 = vsyncmov %s986
  %s988 = vpop.sfrf %987
  %p989 = scmp.eq.s32.totalorder %s988, 0
  %p990 = pneg %p989
  %992 = shalt.err (%p990)
  %s993 = scalar_lea.sflag [#allocation8], 2
  %994 = vsyncmov %s993
  %s995 = vpop.sfrf %994
  %p996 = scmp.eq.s32.totalorder %s995, 0
  %p997 = pneg %p996
  %999 = shalt.err (%p997)
  %s1000 = scalar_lea.sflag [#allocation8], 3
  %1001 = vsyncmov %s1000
  %s1002 = vpop.sfrf %1001
  %p1003 = scmp.eq.s32.totalorder %s1002, 0
  %p1004 = pneg %p1003
  %1006 = shalt.err (%p1004)
  %s1007 = scalar_lea.sflag [#allocation8], 4
  %1008 = vsyncmov %s1007
  %s1009 = vpop.sfrf %1008
  %p1010 = scmp.eq.s32.totalorder %s1009, 0
  %p1011 = pneg %p1010
  %1013 = shalt.err (%p1011)
  %s1014 = scalar_lea.sflag [#allocation8], 5
  %1015 = vsyncmov %s1014
  %s1016 = vpop.sfrf %1015
  %p1017 = scmp.eq.s32.totalorder %s1016, 0
  %p1018 = pneg %p1017
  %1020 = shalt.err (%p1018)

</llo_original>
